<compile_context>
chip_gen: v7x
topology: tpu7x:2x2x1
jax: 0.10.0
libtpu: 0.0.40
codegen_flags: <defaults>
</compile_context>

<pallas_src>
import functools
import math

import numpy as np
import jax
import jax.numpy as jnp
from jax import lax
from jax.experimental import pallas as pl
from jax.experimental.pallas import tpu as pltpu

EPS = 1e-5                      # PyTorch BatchNorm1d default eps
LANE = 128                      # TPU lane width (last dim)
SUBLANE = 8                     # f32 sublane count
TK = 128                        # K-tile width: the feature bank is read in 128-col blocks
VMEM_LIMIT = 48 * 1024 * 1024   # headroom under v7x's 64 MiB physical VMEM


def round_up(x, m):
    return ((x + m - 1) // m) * m


def pick_tile(dim, cap=512):
    """Largest multiple of 128 that divides `dim` and is <= cap."""
    best = LANE
    d = LANE
    while d <= min(cap, dim):
        if dim % d == 0:
            best = d
        d += LANE
    return best


# ---------------------------------------------------------------------------
# Kernels
# ---------------------------------------------------------------------------
def direct_linear_kernel(x_ref, w_ref, b_ref, o_ref, acc_ref, *, batch):
    """Tiled o = x @ W + b with f32 accumulation; pad rows forced to zero."""
    k = pl.program_id(1)

    @pl.when(k == 0)
    def _():
        acc_ref[...] = jnp.zeros_like(acc_ref)

    acc_ref[...] += jnp.dot(x_ref[...].astype(jnp.bfloat16), w_ref[...],
                            preferred_element_type=jnp.float32)

    @pl.when(k == pl.num_programs(1) - 1)
    def _():
        out = acc_ref[...] + b_ref[...]
        row = lax.broadcasted_iota(jnp.int32, out.shape, 0)
        o_ref[...] = jnp.where(row < batch, out, 0.0)


def layer_kernel(kb_tbl, wb_tbl, cnt_tbl,                  # scalar prefetch (SMEM)
                 bank_ref, w_ref, b_ref, g_ref, be_ref,
                 a1w_ref, a1b_ref, a2w_ref, a2b_ref,       # VMEM input tiles
                 hbn_ref, aux_ref,                         # outputs
                 acc_ref,                                  # scratch
                 *, batch, apply_sigmoid):
    """One fused DAG-layer N-tile: block-sparse matmul -> tanh -> BatchNorm1d ->
    per-term aux head (Linear(H,1) -> tanh -> Linear(1,1) [-> sigmoid])."""
    n = pl.program_id(0)
    kk = pl.program_id(1)

    @pl.when(kk == 0)
    def _():
        acc_ref[...] = jnp.zeros_like(acc_ref)

    # Skip padded K steps (tiles with fewer non-zero weight blocks than KMAX).
    @pl.when(kk < cnt_tbl[n])
    def _():
        acc_ref[...] += jnp.dot(bank_ref[...].astype(jnp.bfloat16), w_ref[0],
                                preferred_element_type=jnp.float32)

    @pl.when(kk == pl.num_programs(1) - 1)
    def _():
        h = jnp.tanh(acc_ref[...] + b_ref[...])
        # Training-mode BatchNorm1d stats over the REAL batch rows only, via a
        # masked reduction (no partial sublane slice).
        row = lax.broadcasted_iota(jnp.int32, h.shape, 0)
        mask = (row < batch).astype(jnp.float32)
        inv_b = 1.0 / batch
        mu = jnp.sum(h * mask, axis=0, keepdims=True) * inv_b
        d = (h - mu) * mask
        var = jnp.sum(d * d, axis=0, keepdims=True) * inv_b            # biased
        hbn = (h - mu) * lax.rsqrt(var + EPS) * g_ref[...] + be_ref[...]
        hbn = hbn * mask                       # keep pad rows exactly 0 in the bank
        hbn_ref[...] = hbn
        # Aux head for the terms covered by this N tile (lane-dense 128-wide out).
        a1 = jnp.tanh(jnp.dot(hbn.astype(jnp.bfloat16), a1w_ref[...],
                              preferred_element_type=jnp.float32) + a1b_ref[...])
        a2 = a1 * a2w_ref[...] + a2b_ref[...]
        aux_ref[...] = jax.nn.sigmoid(a2) if apply_sigmoid else a2


# ---------------------------------------------------------------------------
# pallas_call wrappers
# ---------------------------------------------------------------------------
def pallas_direct_linear(xp, w_bf16, b, *, batch):
    B_pad, G_pad = xp.shape
    ND_pad = w_bf16.shape[1]
    tkd = pick_tile(G_pad)
    tnd = pick_tile(ND_pad)
    grid = (ND_pad // tnd, G_pad // tkd)
    flops = 2 * B_pad * G_pad * ND_pad
    bytes_acc = (grid[0] * B_pad * G_pad * 4 + G_pad * ND_pad * 2
                 + ND_pad * 4 + B_pad * ND_pad * 4)
    return pl.pallas_call(
        functools.partial(direct_linear_kernel, batch=batch),
        out_shape=jax.ShapeDtypeStruct((B_pad, ND_pad), jnp.float32),
        grid_spec=pltpu.PrefetchScalarGridSpec(
            num_scalar_prefetch=0,
            grid=grid,
            in_specs=[
                pl.BlockSpec((B_pad, tkd), lambda n, k: (0, k)),
                pl.BlockSpec((tkd, tnd), lambda n, k: (k, n)),
                pl.BlockSpec((1, tnd), lambda n, k: (0, n)),
            ],
            out_specs=pl.BlockSpec((B_pad, tnd), lambda n, k: (0, n)),
            scratch_shapes=[pltpu.VMEM((B_pad, tnd), jnp.float32)],
        ),
        compiler_params=pltpu.CompilerParams(
            dimension_semantics=("parallel", "arbitrary"),
            vmem_limit_bytes=VMEM_LIMIT),
        cost_estimate=pl.CostEstimate(flops=flops, transcendentals=0,
                                      bytes_accessed=bytes_acc),
    )(xp, w_bf16, b)


def pallas_layer(bank, lp, lmeta, *, batch, apply_sigmoid):
    """One fused pallas_call for a whole DAG layer (block-sparse packing)."""
    B_pad = bank.shape[0]
    TN, NT, KMAX = lmeta["TN"], lmeta["NT"], lmeta["KMAX"]
    N_pad = NT * TN
    AUXW = NT * LANE
    nblk = lp["w"].shape[0]
    flops = 2 * B_pad * TK * TN * nblk + 2 * B_pad * TN * LANE * NT
    transc = B_pad * (N_pad + 2 * AUXW)
    bytes_acc = (NT * KMAX * B_pad * TK * 4 + nblk * TK * TN * 2
                 + N_pad * LANE * 2 + B_pad * (N_pad + AUXW) * 4 + 7 * N_pad * 4)
    kernel = functools.partial(layer_kernel, batch=batch,
                               apply_sigmoid=apply_sigmoid)
    return pl.pallas_call(
        kernel,
        out_shape=(jax.ShapeDtypeStruct((B_pad, N_pad), jnp.float32),   # hbn slab
                   jax.ShapeDtypeStruct((B_pad, AUXW), jnp.float32)),   # aux slab
        grid_spec=pltpu.PrefetchScalarGridSpec(
            num_scalar_prefetch=3,
            grid=(NT, KMAX),
            in_specs=[
                # feature bank: K block chosen by the scalar-prefetched table
                pl.BlockSpec((B_pad, TK),
                             lambda n, kk, kb, wb, cnt: (0, kb[n * KMAX + kk])),
                # compact stack of non-zero weight K-blocks
                pl.BlockSpec((1, TK, TN),
                             lambda n, kk, kb, wb, cnt: (wb[n * KMAX + kk], 0, 0)),
                pl.BlockSpec((1, TN), lambda n, kk, *_: (0, n)),     # bias
                pl.BlockSpec((1, TN), lambda n, kk, *_: (0, n)),     # BN gamma
                pl.BlockSpec((1, TN), lambda n, kk, *_: (0, n)),     # BN beta
                pl.BlockSpec((TN, LANE), lambda n, kk, *_: (n, 0)),  # aux1 W (block-diag)
                pl.BlockSpec((1, LANE), lambda n, kk, *_: (0, n)),   # aux1 b
                pl.BlockSpec((1, LANE), lambda n, kk, *_: (0, n)),   # aux2 w
                pl.BlockSpec((1, LANE), lambda n, kk, *_: (0, n)),   # aux2 b
            ],
            out_specs=(
                pl.BlockSpec((B_pad, TN), lambda n, kk, *_: (0, n)),
                pl.BlockSpec((B_pad, LANE), lambda n, kk, *_: (0, n)),
            ),
            scratch_shapes=[pltpu.VMEM((B_pad, TN), jnp.float32)],
        ),
        compiler_params=pltpu.CompilerParams(
            dimension_semantics=("parallel", "arbitrary"),
            vmem_limit_bytes=VMEM_LIMIT),
        cost_estimate=pl.CostEstimate(flops=flops, transcendentals=transc,
                                      bytes_accessed=bytes_acc),
    )(lp["kb_tbl"], lp["wb_tbl"], lp["cnt_tbl"],
      bank, lp["w"], lp["b"], lp["gamma"], lp["beta"],
      lp["a1w"], lp["a1b"], lp["a2w"], lp["a2b"])


# ---------------------------------------------------------------------------
# Deterministic parameter construction (mirrors nn.Linear / BatchNorm1d init),
# packed / padded / pre-transposed ONCE at build time.
# ---------------------------------------------------------------------------
def init_linear(key, in_dim, out_dim):
    k1, k2 = jax.random.split(key)
    bound = 1.0 / (in_dim ** 0.5)
    w = jax.random.uniform(k1, (out_dim, in_dim), jnp.float32, -bound, bound)
    b = jax.random.uniform(k2, (out_dim,), jnp.float32, -bound, bound)
    return np.asarray(w), np.asarray(b)


def build_term_layer_list(children_map):
    """Peel off leaves exactly as the PyTorch __init__ does (out_degree == 0)."""
    remaining = set(children_map.keys())
    layers = []
    while remaining:
        leaves = sorted(n for n in remaining
                        if not any(c in remaining for c in children_map[n]))
        if not leaves:
            break
        layers.append(leaves)
        remaining -= set(leaves)
    return layers


def pack_layer(key, terms, runs_per_term, hb):
    """Pack all terms of one DAG layer into block-sparse weight K-blocks addressed
    in feature-bank coordinates, plus the block-diagonal aux head."""
    T = len(terms)
    TN = math.lcm(LANE, hb)       # term hidden blocks never straddle an N tile
    tpt = TN // hb                # terms per N tile (<= 128)
    NT = (T + tpt - 1) // tpt
    N_pad = NT * TN

    # which bank K blocks each N tile touches
    tiles_kb = []
    for nt in range(NT):
        s = set()
        for tl in range(tpt):
            j = nt * tpt + tl
            if j >= T:
                break
            for (bs, ln) in runs_per_term[j]:
                s.update(range(bs // TK, (bs + ln - 1) // TK + 1))
        tiles_kb.append(sorted(s))
    KMAX = max(1, max(len(s) for s in tiles_kb))

    kb_tbl = np.zeros((NT * KMAX,), np.int32)
    wb_tbl = np.zeros((NT * KMAX,), np.int32)
    cnt_tbl = np.asarray([len(s) for s in tiles_kb], np.int32)

    wblocks = []
    b = np.zeros((1, N_pad), np.float32)
    gamma = np.zeros((1, N_pad), np.float32)     # pad columns -> gamma 0 -> output 0
    beta = np.zeros((1, N_pad), np.float32)
    A1 = np.zeros((N_pad, LANE), np.float32)
    a1b = np.zeros((1, NT * LANE), np.float32)
    a2w = np.zeros((1, NT * LANE), np.float32)
    a2b = np.zeros((1, NT * LANE), np.float32)

    for nt in range(NT):
        blkmap = {}
        for idx, kb in enumerate(tiles_kb[nt]):
            blkmap[kb] = len(wblocks)
            wblocks.append(np.zeros((TK, TN), np.float32))
            kb_tbl[nt * KMAX + idx] = kb
            wb_tbl[nt * KMAX + idx] = blkmap[kb]
        for tl in range(tpt):
            j = nt * tpt + tl
            if j >= T:
                break
            in_size = sum(ln for _, ln in runs_per_term[j])
            key, k1, k2, k3 = jax.random.split(key, 4)
            w_t, b_t = init_linear(k1, in_size, hb)       # (hb, in_size)
            a1w_t, a1b_t = init_linear(k2, hb, 1)         # (1, hb)
            a2w_t, a2b_t = init_linear(k3, 1, 1)          # (1, 1)
            wT = w_t.T                                    # (in_size, hb)
            col0 = tl * hb
            row = 0
            for (bs, ln) in runs_per_term[j]:             # PyTorch concat order
                pos = 0
                while pos < ln:
                    c = bs + pos
                    kb = c // TK
                    take = min(ln - pos, (kb + 1) * TK - c)
                    blk = wblocks[blkmap[kb]]
                    blk[c - kb * TK: c - kb * TK + take, col0:col0 + hb] = \
                        wT[row:row + take, :]
                    row += take
                    pos += take
            b[0, nt * TN + col0: nt * TN + col0 + hb] = b_t
            gamma[0, nt * TN + col0: nt * TN + col0 + hb] = 1.0
            A1[nt * TN + col0: nt * TN + col0 + hb, tl] = a1w_t[0]
            a1b[0, nt * LANE + tl] = a1b_t[0]
            a2w[0, nt * LANE + tl] = a2w_t[0, 0]
            a2b[0, nt * LANE + tl] = a2b_t[0]

    w_stack = np.stack(wblocks, 0) if wblocks else np.zeros((1, TK, TN), np.float32)
    params = {
        "kb_tbl": jnp.asarray(kb_tbl), "wb_tbl": jnp.asarray(wb_tbl),
        "cnt_tbl": jnp.asarray(cnt_tbl),
        "w": jnp.asarray(w_stack, dtype=jnp.bfloat16),
        "b": jnp.asarray(b), "gamma": jnp.asarray(gamma), "beta": jnp.asarray(beta),
        "a1w": jnp.asarray(A1, dtype=jnp.bfloat16),
        "a1b": jnp.asarray(a1b), "a2w": jnp.asarray(a2w), "a2b": jnp.asarray(a2b),
    }
    lmeta = {"terms": list(terms), "TN": TN, "NT": NT, "KMAX": KMAX,
             "tpt": tpt, "hb": hb}
    return key, params, lmeta


def build_model(children_map, term_direct_gene_map, gene_dim,
                num_hiddens_genotype, num_hiddens_final, root, seed=0):
    H, Hf = num_hiddens_genotype, num_hiddens_final
    key = jax.random.PRNGKey(seed)
    term_layer_list = build_term_layer_list(children_map)

    # ---- direct gene layers: one lane-dense slab at bank columns [0, ND_pad) ----
    direct_terms = sorted(term_direct_gene_map)
    direct_off, w_cols, b_vals = {}, [], []
    cursor = 0
    for term in direct_terms:
        n_genes = len(term_direct_gene_map[term])
        key, sub = jax.random.split(key)
        w, bvec = init_linear(sub, gene_dim, n_genes)     # (n_genes, gene_dim)
        direct_off[term] = cursor
        cursor += n_genes
        w_cols.append(w.T)
        b_vals.append(bvec)
    n_direct = cursor
    G_pad = round_up(gene_dim, LANE)
    ND_pad = round_up(max(n_direct, 1), LANE)
    Wd = np.zeros((G_pad, ND_pad), np.float32)
    bd = np.zeros((1, ND_pad), np.float32)
    if n_direct:
        Wd[:gene_dim, :n_direct] = np.concatenate(w_cols, axis=1)
        bd[0, :n_direct] = np.concatenate(b_vals)

    params = {"direct": {"w": jnp.asarray(Wd, dtype=jnp.bfloat16),
                         "b": jnp.asarray(bd)},
              "layers": [], "final": None}
    meta = {"layers": [], "H": H, "Hf": Hf, "gene_dim": gene_dim,
            "G_pad": G_pad, "ND_pad": ND_pad}

    term_bank_col = {}            # bank column of each term's H-wide hidden block
    bank_cursor = ND_pad

    for layer in term_layer_list:
        terms, runs_per_term = [], []
        for term in layer:
            runs = []
            for child in children_map[term]:
                if child in term_bank_col:
                    runs.append((term_bank_col[child], H))
            if term in term_direct_gene_map:
                runs.append((direct_off[term], len(term_direct_gene_map[term])))
            if not runs:
                continue          # input_size == 0 -> no module (matches PyTorch)
            terms.append(term)
            runs_per_term.append(runs)
        if not terms:
            continue
        key, lp, lmeta = pack_layer(key, terms, runs_per_term, H)
        lmeta["bank_off"] = bank_cursor
        for j, term in enumerate(terms):
            term_bank_col[term] = bank_cursor + j * H
        bank_cursor += lmeta["NT"] * lmeta["TN"]
        params["layers"].append(lp)
        meta["layers"].append(lmeta)

    meta["bank_width"] = bank_cursor

    # ---- final head: a single "term" of width Hf reading the root's hidden block
    key, fp, fmeta = pack_layer(key, ["final"], [[(term_bank_col[root], H)]], Hf)
    params["final"] = fp
    meta["final"] = fmeta
    return params, meta


# ---------------------------------------------------------------------------
# Forward pass (mirrors genecell_nn.forward); slabs inside jit, dict views outside
# ---------------------------------------------------------------------------
def build_forward(meta):
    H, Hf = meta["H"], meta["Hf"]
    gene_dim, G_pad = meta["gene_dim"], meta["G_pad"]
    ND_pad, bank_width = meta["ND_pad"], meta["bank_width"]
    layer_metas = meta["layers"]
    fmeta = meta["final"]

    @jax.jit
    def forward(params, x):
        B = x.shape[0]
        B_pad = round_up(max(B, SUBLANE), SUBLANE)
        xp = jnp.pad(x.astype(jnp.float32),
                     ((0, B_pad - B), (0, G_pad - gene_dim)))
        # All direct-gene Linear layers in one tiled call -> start of the bank.
        direct = pallas_direct_linear(xp, params["direct"]["w"],
                                      params["direct"]["b"], batch=B)
        bank = jnp.pad(direct, ((0, 0), (0, bank_width - ND_pad)))
        hbn_slabs, aux_slabs = [], []
        for li, lmeta in enumerate(layer_metas):
            hbn, aux = pallas_layer(bank, params["layers"][li], lmeta,
                                    batch=B, apply_sigmoid=False)
            bank = lax.dynamic_update_slice(bank, hbn, (0, lmeta["bank_off"]))
            hbn_slabs.append(hbn)
            aux_slabs.append(aux)
        fhbn, faux = pallas_layer(bank, params["final"], fmeta,
                                  batch=B, apply_sigmoid=True)
        return hbn_slabs, aux_slabs, fhbn, faux

    def run(params, x):
        B = x.shape[0]
        hbn_slabs, aux_slabs, fhbn, faux = forward(params, x)
        term_out_map, aux_out_map = {}, {}
        for li, lmeta in enumerate(layer_metas):
            tpt = lmeta["tpt"]
            for j, term in enumerate(lmeta["terms"]):
                term_out_map[term] = hbn_slabs[li][:B, j * H:(j + 1) * H]
                nt, tl = divmod(j, tpt)
                c = nt * LANE + tl
                aux_out_map[term] = aux_slabs[li][:B, c:c + 1]
        term_out_map["final"] = fhbn[:B, :Hf]
        aux_out_map["final"] = faux[:B, 0:1]
        return aux_out_map, term_out_map

    return run


# ---------------------------------------------------------------------------
# Main
# ---------------------------------------------------------------------------
if __name__ == "__main__":
    # Small synthetic ontology (DAG), defined as a children adjacency map.
    #        root
    #       /    \
    #      T1     T2 (leaf, direct genes)
    #      |
    #      T3 (leaf, direct genes)
    children_map = {
        "root": ["T1", "T2"],
        "T1": ["T3"],
        "T2": [],
        "T3": [],
    }
    term_direct_gene_map = {
        "T1": [0, 3, 7],                 # 3 directly annotated genes
        "T2": [1, 2, 5, 9, 12],          # 5 genes
        "T3": [4, 6, 8, 10, 11, 13],     # 6 genes
    }
    root = "root"
    gene_dim = 16
    num_hiddens_genotype = 8
    num_hiddens_final = 8
    batch = 6            # not a multiple of 8 -> exercises the masked BatchNorm path

    params, meta = build_model(children_map, term_direct_gene_map, gene_dim,
                               num_hiddens_genotype, num_hiddens_final, root,
                               seed=0)
    run = build_forward(meta)

    x = jax.random.normal(jax.random.PRNGKey(0), (batch, gene_dim), jnp.float32)
    aux_out_map, term_out_map = run(params, x)

    jax.block_until_ready(aux_out_map["final"])
    jax.block_until_ready(term_out_map["final"])

    # basic sanity on shapes / values
    assert aux_out_map["final"].shape == (batch, 1)
    assert term_out_map["final"].shape == (batch, num_hiddens_final)
    for t in ("T1", "T2", "T3", "root"):
        assert term_out_map[t].shape == (batch, num_hiddens_genotype)
        assert aux_out_map[t].shape == (batch, 1)
    for t in ("T1", "T2", "T3", "root", "final"):
        assert bool(jnp.all(jnp.isfinite(aux_out_map[t])))
        assert bool(jnp.all(jnp.isfinite(term_out_map[t])))
    assert bool(jnp.all((aux_out_map["final"] >= 0) & (aux_out_map["final"] <= 1)))

    print("KERNEL_OK")
</pallas_src>

<mosaic_0001>
module attributes {stable_mosaic.version = 11 : i64} {
  func.func @direct_linear_kernel(%arg0: i32, %arg1: i32, %arg2: memref<8x128xf32, #tpu.memory_space<vmem>>, %arg3: memref<128x128xbf16, #tpu.memory_space<vmem>>, %arg4: memref<1x128xf32, #tpu.memory_space<vmem>>, %arg5: memref<8x128xf32, #tpu.memory_space<vmem>>, %arg6: memref<8x128xf32, #tpu.memory_space<vmem>>) attributes {dimension_semantics = [#tpu.dimension_semantics<parallel>, #tpu.dimension_semantics<arbitrary>], iteration_bounds = array<i64: 1, 1>, scalar_prefetch = 0 : i64, scratch_operands = 1 : i64, tpu.core_type = #tpu.core_type<tc>, window_params = [{transform_indices = @transform_0, window_bounds = array<i64: 8, 128>}, {transform_indices = @transform_1, window_bounds = array<i64: 128, 128>}, {transform_indices = @transform_2, window_bounds = array<i64: 1, 128>}, {transform_indices = @transform_3, window_bounds = array<i64: 8, 128>}]} {
    %c0_i32 = arith.constant 0 : i32
    %0 = arith.cmpi eq, %arg1, %c0_i32 : i32
    %1 = arith.extui %0 : i1 to i32
    %c0_i32_0 = arith.constant 0 : i32
    %2 = arith.cmpi ne, %1, %c0_i32_0 : i32
    scf.if %2 {
      %cst_10 = arith.constant 0.000000e+00 : f32
      %13 = vector.broadcast %cst_10 : f32 to vector<8x128xf32>
      %c0_11 = arith.constant 0 : index
      %c0_12 = arith.constant 0 : index
      %14 = vector.load %arg6[%c0_11, %c0_12] : memref<8x128xf32, #tpu.memory_space<vmem>>, vector<8x128xf32>
      tpu.vector_store %arg6[%c0_11, %c0_12], %13 {strides = array<i32>} : memref<8x128xf32, #tpu.memory_space<vmem>>, vector<8x128xf32>,
    } else {
    }
    %c0 = arith.constant 0 : index
    %c0_1 = arith.constant 0 : index
    %3 = vector.load %arg6[%c0, %c0_1] : memref<8x128xf32, #tpu.memory_space<vmem>>, vector<8x128xf32>
    %c0_2 = arith.constant 0 : index
    %c0_3 = arith.constant 0 : index
    %4 = vector.load %arg2[%c0_2, %c0_3] : memref<8x128xf32, #tpu.memory_space<vmem>>, vector<8x128xf32>
    %5 = arith.truncf %4 : vector<8x128xf32> to vector<8x128xbf16>
    %c0_4 = arith.constant 0 : index
    %c0_5 = arith.constant 0 : index
    %6 = vector.load %arg3[%c0_4, %c0_5] : memref<128x128xbf16, #tpu.memory_space<vmem>>, vector<128x128xbf16>
    %cst = arith.constant dense<0.000000e+00> : vector<8x128xf32>
    %7 = tpu.matmul %5, %6, %cst {dimension_numbers = #tpu.dot_dimension_numbers<[1], [0], [0], [1], [0, 0, 1, 1], [], []>} : vector<8x128xbf16>, vector<128x128xbf16>, vector<8x128xf32> -> vector<8x128xf32>
    %8 = arith.addf %3, %7 : vector<8x128xf32>
    %c0_6 = arith.constant 0 : index
    %c0_7 = arith.constant 0 : index
    %9 = vector.load %arg6[%c0_6, %c0_7] : memref<8x128xf32, #tpu.memory_space<vmem>>, vector<8x128xf32>
    tpu.vector_store %arg6[%c0_6, %c0_7], %8 {strides = array<i32>} : memref<8x128xf32, #tpu.memory_space<vmem>>, vector<8x128xf32>,
    %c0_i32_8 = arith.constant 0 : i32
    %10 = arith.cmpi eq, %arg1, %c0_i32_8 : i32
    %11 = arith.extui %10 : i1 to i32
    %c0_i32_9 = arith.constant 0 : i32
    %12 = arith.cmpi ne, %11, %c0_i32_9 : i32
    scf.if %12 {
      %c0_10 = arith.constant 0 : index
      %c0_11 = arith.constant 0 : index
      %13 = vector.load %arg6[%c0_10, %c0_11] : memref<8x128xf32, #tpu.memory_space<vmem>>, vector<8x128xf32>
      %c0_12 = arith.constant 0 : index
      %c0_13 = arith.constant 0 : index
      %14 = vector.load %arg4[%c0_12, %c0_13] : memref<1x128xf32, #tpu.memory_space<vmem>>, vector<1x128xf32>
      %15 = vector.broadcast %14 : vector<1x128xf32> to vector<8x128xf32>
      %16 = arith.addf %13, %15 : vector<8x128xf32>
      %17 = tpu.iota {dimensions = array<i32: 0>} : vector<8x128xi32>
      %c6_i32 = arith.constant 6 : i32
      %18 = vector.broadcast %c6_i32 : i32 to vector<8x128xi32>
      %19 = arith.cmpi slt, %17, %18 : vector<8x128xi32>
      %cst_14 = arith.constant 0.000000e+00 : f32
      %20 = vector.broadcast %cst_14 : f32 to vector<8x128xf32>
      %21 = arith.select %19, %16, %20 : vector<8x128xi1>, vector<8x128xf32>
      %c0_15 = arith.constant 0 : index
      %c0_16 = arith.constant 0 : index
      %22 = vector.load %arg5[%c0_15, %c0_16] : memref<8x128xf32, #tpu.memory_space<vmem>>, vector<8x128xf32>
      tpu.vector_store %arg5[%c0_15, %c0_16], %21 {strides = array<i32>} : memref<8x128xf32, #tpu.memory_space<vmem>>, vector<8x128xf32>,
    } else {
    }
    return
  }
  func.func @transform_0(%arg0: i32, %arg1: i32) -> (i32, i32) {
    %c0_i32 = arith.constant 0 : i32
    %c0_i32_0 = arith.constant 0 : i32
    return %c0_i32, %arg1 : i32, i32
  }
  func.func @transform_1(%arg0: i32, %arg1: i32) -> (i32, i32) {
    %c0_i32 = arith.constant 0 : i32
    return %arg1, %arg0 : i32, i32
  }
  func.func @transform_2(%arg0: i32, %arg1: i32) -> (i32, i32) {
    %c0_i32 = arith.constant 0 : i32
    %c0_i32_0 = arith.constant 0 : i32
    return %c0_i32, %arg0 : i32, i32
  }
  func.func @transform_3(%arg0: i32, %arg1: i32) -> (i32, i32) {
    %c0_i32 = arith.constant 0 : i32
    %c0_i32_0 = arith.constant 0 : i32
    return %c0_i32, %arg0 : i32, i32
  }
}

module attributes {stable_mosaic.version = 11 : i64} {
  func.func @layer_kernel(%arg0: i32, %arg1: i32, %arg2: memref<1xi32, #tpu.memory_space<smem>>, %arg3: memref<1xi32, #tpu.memory_space<smem>>, %arg4: memref<1xi32, #tpu.memory_space<smem>>, %arg5: memref<8x128xf32, #tpu.memory_space<vmem>>, %arg6: memref<1x128x128xbf16, #tpu.memory_space<vmem>>, %arg7: memref<1x128xf32, #tpu.memory_space<vmem>>, %arg8: memref<1x128xf32, #tpu.memory_space<vmem>>, %arg9: memref<1x128xf32, #tpu.memory_space<vmem>>, %arg10: memref<128x128xbf16, #tpu.memory_space<vmem>>, %arg11: memref<1x128xf32, #tpu.memory_space<vmem>>, %arg12: memref<1x128xf32, #tpu.memory_space<vmem>>, %arg13: memref<1x128xf32, #tpu.memory_space<vmem>>, %arg14: memref<8x128xf32, #tpu.memory_space<vmem>>, %arg15: memref<8x128xf32, #tpu.memory_space<vmem>>, %arg16: memref<8x128xf32, #tpu.memory_space<vmem>>) attributes {dimension_semantics = [#tpu.dimension_semantics<parallel>, #tpu.dimension_semantics<arbitrary>], iteration_bounds = array<i64: 1, 1>, scalar_prefetch = 3 : i64, scratch_operands = 1 : i64, tpu.core_type = #tpu.core_type<tc>, window_params = [{transform_indices = @transform_0, window_bounds = array<i64: 8, 128>}, {transform_indices = @transform_1, window_bounds = array<i64: 1, 128, 128>}, {transform_indices = @transform_2, window_bounds = array<i64: 1, 128>}, {transform_indices = @transform_3, window_bounds = array<i64: 1, 128>}, {transform_indices = @transform_4, window_bounds = array<i64: 1, 128>}, {transform_indices = @transform_5, window_bounds = array<i64: 128, 128>}, {transform_indices = @transform_6, window_bounds = array<i64: 1, 128>}, {transform_indices = @transform_7, window_bounds = array<i64: 1, 128>}, {transform_indices = @transform_8, window_bounds = array<i64: 1, 128>}, {transform_indices = @transform_9, window_bounds = array<i64: 8, 128>}, {transform_indices = @transform_10, window_bounds = array<i64: 8, 128>}]} {
    %c0_i32 = arith.constant 0 : i32
    %0 = arith.cmpi eq, %arg1, %c0_i32 : i32
    %1 = arith.extui %0 : i1 to i32
    %c0_i32_0 = arith.constant 0 : i32
    %2 = arith.cmpi ne, %1, %c0_i32_0 : i32
    scf.if %2 {
      %cst = arith.constant 0.000000e+00 : f32
      %11 = vector.broadcast %cst : f32 to vector<8x128xf32>
      %c0 = arith.constant 0 : index
      %c0_4 = arith.constant 0 : index
      %12 = vector.load %arg16[%c0, %c0_4] : memref<8x128xf32, #tpu.memory_space<vmem>>, vector<8x128xf32>
      tpu.vector_store %arg16[%c0, %c0_4], %11 {strides = array<i32>} : memref<8x128xf32, #tpu.memory_space<vmem>>, vector<8x128xf32>,
    } else {
    }
    %3 = arith.index_cast %arg0 : i32 to index
    %4 = memref.load %arg4[%3] : memref<1xi32, #tpu.memory_space<smem>>
    %5 = arith.cmpi slt, %arg1, %4 : i32
    %6 = arith.extui %5 : i1 to i32
    %c0_i32_1 = arith.constant 0 : i32
    %7 = arith.cmpi ne, %6, %c0_i32_1 : i32
    scf.if %7 {
      %c0 = arith.constant 0 : index
      %c0_4 = arith.constant 0 : index
      %11 = vector.load %arg16[%c0, %c0_4] : memref<8x128xf32, #tpu.memory_space<vmem>>, vector<8x128xf32>
      %c0_5 = arith.constant 0 : index
      %c0_6 = arith.constant 0 : index
      %12 = vector.load %arg5[%c0_5, %c0_6] : memref<8x128xf32, #tpu.memory_space<vmem>>, vector<8x128xf32>
      %13 = arith.truncf %12 : vector<8x128xf32> to vector<8x128xbf16>
      %c0_7 = arith.constant 0 : index
      %c0_8 = arith.constant 0 : index
      %c0_9 = arith.constant 0 : index
      %14 = vector.load %arg6[%c0_7, %c0_8, %c0_9] : memref<1x128x128xbf16, #tpu.memory_space<vmem>>, vector<1x128x128xbf16>
      %15 = vector.shape_cast %14 : vector<1x128x128xbf16> to vector<128x128xbf16>
      %cst = arith.constant dense<0.000000e+00> : vector<8x128xf32>
      %16 = tpu.matmul %13, %15, %cst {dimension_numbers = #tpu.dot_dimension_numbers<[1], [0], [0], [1], [0, 0, 1, 1], [], []>} : vector<8x128xbf16>, vector<128x128xbf16>, vector<8x128xf32> -> vector<8x128xf32>
      %17 = arith.addf %11, %16 : vector<8x128xf32>
      %c0_10 = arith.constant 0 : index
      %c0_11 = arith.constant 0 : index
      %18 = vector.load %arg16[%c0_10, %c0_11] : memref<8x128xf32, #tpu.memory_space<vmem>>, vector<8x128xf32>
      tpu.vector_store %arg16[%c0_10, %c0_11], %17 {strides = array<i32>} : memref<8x128xf32, #tpu.memory_space<vmem>>, vector<8x128xf32>,
    } else {
    }
    %c0_i32_2 = arith.constant 0 : i32
    %8 = arith.cmpi eq, %arg1, %c0_i32_2 : i32
    %9 = arith.extui %8 : i1 to i32
    %c0_i32_3 = arith.constant 0 : i32
    %10 = arith.cmpi ne, %9, %c0_i32_3 : i32
    scf.if %10 {
      %c0 = arith.constant 0 : index
      %c0_4 = arith.constant 0 : index
      %11 = vector.load %arg16[%c0, %c0_4] : memref<8x128xf32, #tpu.memory_space<vmem>>, vector<8x128xf32>
      %c0_5 = arith.constant 0 : index
      %c0_6 = arith.constant 0 : index
      %12 = vector.load %arg7[%c0_5, %c0_6] : memref<1x128xf32, #tpu.memory_space<vmem>>, vector<1x128xf32>
      %13 = vector.broadcast %12 : vector<1x128xf32> to vector<8x128xf32>
      %14 = arith.addf %11, %13 : vector<8x128xf32>
      %15 = math.tanh %14 : vector<8x128xf32>
      %16 = tpu.iota {dimensions = array<i32: 0>} : vector<8x128xi32>
      %c6_i32 = arith.constant 6 : i32
      %17 = vector.broadcast %c6_i32 : i32 to vector<8x128xi32>
      %18 = arith.cmpi slt, %16, %17 : vector<8x128xi32>
      %19 = arith.extui %18 : vector<8x128xi1> to vector<8x128xi32>
      %20 = arith.sitofp %19 : vector<8x128xi32> to vector<8x128xf32>
      %21 = arith.mulf %15, %20 : vector<8x128xf32>
      %cst = arith.constant dense<0.000000e+00> : vector<128xf32>
      %22 = vector.multi_reduction <add>, %21, %cst [0] : vector<8x128xf32> to vector<128xf32>
      %23 = vector.shape_cast %22 : vector<128xf32> to vector<1x128xf32>
      %cst_7 = arith.constant 0.166666672 : f32
      %24 = vector.broadcast %cst_7 : f32 to vector<1x128xf32>
      %25 = arith.mulf %23, %24 : vector<1x128xf32>
      %26 = vector.broadcast %25 : vector<1x128xf32> to vector<8x128xf32>
      %27 = arith.subf %15, %26 : vector<8x128xf32>
      %28 = arith.mulf %27, %20 : vector<8x128xf32>
      %29 = arith.mulf %28, %28 : vector<8x128xf32>
      %cst_8 = arith.constant dense<0.000000e+00> : vector<128xf32>
      %30 = vector.multi_reduction <add>, %29, %cst_8 [0] : vector<8x128xf32> to vector<128xf32>
      %31 = vector.shape_cast %30 : vector<128xf32> to vector<1x128xf32>
      %cst_9 = arith.constant 0.166666672 : f32
      %32 = vector.broadcast %cst_9 : f32 to vector<1x128xf32>
      %33 = arith.mulf %31, %32 : vector<1x128xf32>
      %34 = vector.broadcast %25 : vector<1x128xf32> to vector<8x128xf32>
      %35 = arith.subf %15, %34 : vector<8x128xf32>
      %cst_10 = arith.constant 9.99999974E-6 : f32
      %36 = vector.broadcast %cst_10 : f32 to vector<1x128xf32>
      %37 = arith.addf %33, %36 : vector<1x128xf32>
      %38 = math.rsqrt %37 : vector<1x128xf32>
      %39 = vector.broadcast %38 : vector<1x128xf32> to vector<8x128xf32>
      %40 = arith.mulf %35, %39 : vector<8x128xf32>
      %c0_11 = arith.constant 0 : index
      %c0_12 = arith.constant 0 : index
      %41 = vector.load %arg8[%c0_11, %c0_12] : memref<1x128xf32, #tpu.memory_space<vmem>>, vector<1x128xf32>
      %42 = vector.broadcast %41 : vector<1x128xf32> to vector<8x128xf32>
      %43 = arith.mulf %40, %42 : vector<8x128xf32>
      %c0_13 = arith.constant 0 : index
      %c0_14 = arith.constant 0 : index
      %44 = vector.load %arg9[%c0_13, %c0_14] : memref<1x128xf32, #tpu.memory_space<vmem>>, vector<1x128xf32>
      %45 = vector.broadcast %44 : vector<1x128xf32> to vector<8x128xf32>
      %46 = arith.addf %43, %45 : vector<8x128xf32>
      %47 = arith.mulf %46, %20 : vector<8x128xf32>
      %c0_15 = arith.constant 0 : index
      %c0_16 = arith.constant 0 : index
      %48 = vector.load %arg14[%c0_15, %c0_16] : memref<8x128xf32, #tpu.memory_space<vmem>>, vector<8x128xf32>
      tpu.vector_store %arg14[%c0_15, %c0_16], %47 {strides = array<i32>} : memref<8x128xf32, #tpu.memory_space<vmem>>, vector<8x128xf32>,
      %49 = arith.truncf %47 : vector<8x128xf32> to vector<8x128xbf16>
      %c0_17 = arith.constant 0 : index
      %c0_18 = arith.constant 0 : index
      %50 = vector.load %arg10[%c0_17, %c0_18] : memref<128x128xbf16, #tpu.memory_space<vmem>>, vector<128x128xbf16>
      %cst_19 = arith.constant dense<0.000000e+00> : vector<8x128xf32>
      %51 = tpu.matmul %49, %50, %cst_19 {dimension_numbers = #tpu.dot_dimension_numbers<[1], [0], [0], [1], [0, 0, 1, 1], [], []>} : vector<8x128xbf16>, vector<128x128xbf16>, vector<8x128xf32> -> vector<8x128xf32>
      %c0_20 = arith.constant 0 : index
      %c0_21 = arith.constant 0 : index
      %52 = vector.load %arg11[%c0_20, %c0_21] : memref<1x128xf32, #tpu.memory_space<vmem>>, vector<1x128xf32>
      %53 = vector.broadcast %52 : vector<1x128xf32> to vector<8x128xf32>
      %54 = arith.addf %51, %53 : vector<8x128xf32>
      %55 = math.tanh %54 : vector<8x128xf32>
      %c0_22 = arith.constant 0 : index
      %c0_23 = arith.constant 0 : index
      %56 = vector.load %arg12[%c0_22, %c0_23] : memref<1x128xf32, #tpu.memory_space<vmem>>, vector<1x128xf32>
      %57 = vector.broadcast %56 : vector<1x128xf32> to vector<8x128xf32>
      %58 = arith.mulf %55, %57 : vector<8x128xf32>
      %c0_24 = arith.constant 0 : index
      %c0_25 = arith.constant 0 : index
      %59 = vector.load %arg13[%c0_24, %c0_25] : memref<1x128xf32, #tpu.memory_space<vmem>>, vector<1x128xf32>
      %60 = vector.broadcast %59 : vector<1x128xf32> to vector<8x128xf32>
      %61 = arith.addf %58, %60 : vector<8x128xf32>
      %c0_26 = arith.constant 0 : index
      %c0_27 = arith.constant 0 : index
      %62 = vector.load %arg15[%c0_26, %c0_27] : memref<8x128xf32, #tpu.memory_space<vmem>>, vector<8x128xf32>
      tpu.vector_store %arg15[%c0_26, %c0_27], %61 {strides = array<i32>} : memref<8x128xf32, #tpu.memory_space<vmem>>, vector<8x128xf32>,
    } else {
    }
    return
  }
  func.func @transform_0(%arg0: i32, %arg1: i32, %arg2: memref<1xi32, #tpu.memory_space<smem>>, %arg3: memref<1xi32, #tpu.memory_space<smem>>, %arg4: memref<1xi32, #tpu.memory_space<smem>>) -> (i32, i32) {
    %c1_i32 = arith.constant 1 : i32
    %0 = arith.muli %arg0, %c1_i32 : i32
    %1 = arith.addi %0, %arg1 : i32
    %2 = arith.index_cast %1 : i32 to index
    %3 = memref.load %arg2[%2] : memref<1xi32, #tpu.memory_space<smem>>
    %c0_i32 = arith.constant 0 : i32
    %c0_i32_0 = arith.constant 0 : i32
    return %c0_i32, %3 : i32, i32
  }
  func.func @transform_1(%arg0: i32, %arg1: i32, %arg2: memref<1xi32, #tpu.memory_space<smem>>, %arg3: memref<1xi32, #tpu.memory_space<smem>>, %arg4: memref<1xi32, #tpu.memory_space<smem>>) -> (i32, i32, i32) {
    %c1_i32 = arith.constant 1 : i32
    %0 = arith.muli %arg0, %c1_i32 : i32
    %1 = arith.addi %0, %arg1 : i32
    %2 = arith.index_cast %1 : i32 to index
    %3 = memref.load %arg3[%2] : memref<1xi32, #tpu.memory_space<smem>>
    %c0_i32 = arith.constant 0 : i32
    %c0_i32_0 = arith.constant 0 : i32
    %c0_i32_1 = arith.constant 0 : i32
    return %3, %c0_i32, %c0_i32_0 : i32, i32, i32
  }
  func.func @transform_2(%arg0: i32, %arg1: i32, %arg2: memref<1xi32, #tpu.memory_space<smem>>, %arg3: memref<1xi32, #tpu.memory_space<smem>>, %arg4: memref<1xi32, #tpu.memory_space<smem>>) -> (i32, i32) {
    %c0_i32 = arith.constant 0 : i32
    %c0_i32_0 = arith.constant 0 : i32
    return %c0_i32, %arg0 : i32, i32
  }
  func.func @transform_3(%arg0: i32, %arg1: i32, %arg2: memref<1xi32, #tpu.memory_space<smem>>, %arg3: memref<1xi32, #tpu.memory_space<smem>>, %arg4: memref<1xi32, #tpu.memory_space<smem>>) -> (i32, i32) {
    %c0_i32 = arith.constant 0 : i32
    %c0_i32_0 = arith.constant 0 : i32
    return %c0_i32, %arg0 : i32, i32
  }
  func.func @transform_4(%arg0: i32, %arg1: i32, %arg2: memref<1xi32, #tpu.memory_space<smem>>, %arg3: memref<1xi32, #tpu.memory_space<smem>>, %arg4: memref<1xi32, #tpu.memory_space<smem>>) -> (i32, i32) {
    %c0_i32 = arith.constant 0 : i32
    %c0_i32_0 = arith.constant 0 : i32
    return %c0_i32, %arg0 : i32, i32
  }
  func.func @transform_5(%arg0: i32, %arg1: i32, %arg2: memref<1xi32, #tpu.memory_space<smem>>, %arg3: memref<1xi32, #tpu.memory_space<smem>>, %arg4: memref<1xi32, #tpu.memory_space<smem>>) -> (i32, i32) {
    %c0_i32 = arith.constant 0 : i32
    %c0_i32_0 = arith.constant 0 : i32
    return %arg0, %c0_i32 : i32, i32
  }
  func.func @transform_6(%arg0: i32, %arg1: i32, %arg2: memref<1xi32, #tpu.memory_space<smem>>, %arg3: memref<1xi32, #tpu.memory_space<smem>>, %arg4: memref<1xi32, #tpu.memory_space<smem>>) -> (i32, i32) {
    %c0_i32 = arith.constant 0 : i32
    %c0_i32_0 = arith.constant 0 : i32
    return %c0_i32, %arg0 : i32, i32
  }
  func.func @transform_7(%arg0: i32, %arg1: i32, %arg2: memref<1xi32, #tpu.memory_space<smem>>, %arg3: memref<1xi32, #tpu.memory_space<smem>>, %arg4: memref<1xi32, #tpu.memory_space<smem>>) -> (i32, i32) {
    %c0_i32 = arith.constant 0 : i32
    %c0_i32_0 = arith.constant 0 : i32
    return %c0_i32, %arg0 : i32, i32
  }
  func.func @transform_8(%arg0: i32, %arg1: i32, %arg2: memref<1xi32, #tpu.memory_space<smem>>, %arg3: memref<1xi32, #tpu.memory_space<smem>>, %arg4: memref<1xi32, #tpu.memory_space<smem>>) -> (i32, i32) {
    %c0_i32 = arith.constant 0 : i32
    %c0_i32_0 = arith.constant 0 : i32
    return %c0_i32, %arg0 : i32, i32
  }
  func.func @transform_9(%arg0: i32, %arg1: i32, %arg2: memref<1xi32, #tpu.memory_space<smem>>, %arg3: memref<1xi32, #tpu.memory_space<smem>>, %arg4: memref<1xi32, #tpu.memory_space<smem>>) -> (i32, i32) {
    %c0_i32 = arith.constant 0 : i32
    %c0_i32_0 = arith.constant 0 : i32
    return %c0_i32, %arg0 : i32, i32
  }
  func.func @transform_10(%arg0: i32, %arg1: i32, %arg2: memref<1xi32, #tpu.memory_space<smem>>, %arg3: memref<1xi32, #tpu.memory_space<smem>>, %arg4: memref<1xi32, #tpu.memory_space<smem>>) -> (i32, i32) {
    %c0_i32 = arith.constant 0 : i32
    %c0_i32_0 = arith.constant 0 : i32
    return %c0_i32, %arg0 : i32, i32
  }
}

module attributes {stable_mosaic.version = 11 : i64} {
  func.func @layer_kernel(%arg0: i32, %arg1: i32, %arg2: memref<2xi32, #tpu.memory_space<smem>>, %arg3: memref<2xi32, #tpu.memory_space<smem>>, %arg4: memref<1xi32, #tpu.memory_space<smem>>, %arg5: memref<8x128xf32, #tpu.memory_space<vmem>>, %arg6: memref<1x128x128xbf16, #tpu.memory_space<vmem>>, %arg7: memref<1x128xf32, #tpu.memory_space<vmem>>, %arg8: memref<1x128xf32, #tpu.memory_space<vmem>>, %arg9: memref<1x128xf32, #tpu.memory_space<vmem>>, %arg10: memref<128x128xbf16, #tpu.memory_space<vmem>>, %arg11: memref<1x128xf32, #tpu.memory_space<vmem>>, %arg12: memref<1x128xf32, #tpu.memory_space<vmem>>, %arg13: memref<1x128xf32, #tpu.memory_space<vmem>>, %arg14: memref<8x128xf32, #tpu.memory_space<vmem>>, %arg15: memref<8x128xf32, #tpu.memory_space<vmem>>, %arg16: memref<8x128xf32, #tpu.memory_space<vmem>>) attributes {dimension_semantics = [#tpu.dimension_semantics<parallel>, #tpu.dimension_semantics<arbitrary>], iteration_bounds = array<i64: 1, 2>, scalar_prefetch = 3 : i64, scratch_operands = 1 : i64, tpu.core_type = #tpu.core_type<tc>, window_params = [{transform_indices = @transform_0, window_bounds = array<i64: 8, 128>}, {transform_indices = @transform_1, window_bounds = array<i64: 1, 128, 128>}, {transform_indices = @transform_2, window_bounds = array<i64: 1, 128>}, {transform_indices = @transform_3, window_bounds = array<i64: 1, 128>}, {transform_indices = @transform_4, window_bounds = array<i64: 1, 128>}, {transform_indices = @transform_5, window_bounds = array<i64: 128, 128>}, {transform_indices = @transform_6, window_bounds = array<i64: 1, 128>}, {transform_indices = @transform_7, window_bounds = array<i64: 1, 128>}, {transform_indices = @transform_8, window_bounds = array<i64: 1, 128>}, {transform_indices = @transform_9, window_bounds = array<i64: 8, 128>}, {transform_indices = @transform_10, window_bounds = array<i64: 8, 128>}]} {
    %c0_i32 = arith.constant 0 : i32
    %0 = arith.cmpi eq, %arg1, %c0_i32 : i32
    %1 = arith.extui %0 : i1 to i32
    %c0_i32_0 = arith.constant 0 : i32
    %2 = arith.cmpi ne, %1, %c0_i32_0 : i32
    scf.if %2 {
      %cst = arith.constant 0.000000e+00 : f32
      %11 = vector.broadcast %cst : f32 to vector<8x128xf32>
      %c0 = arith.constant 0 : index
      %c0_3 = arith.constant 0 : index
      %12 = vector.load %arg16[%c0, %c0_3] : memref<8x128xf32, #tpu.memory_space<vmem>>, vector<8x128xf32>
      tpu.vector_store %arg16[%c0, %c0_3], %11 {strides = array<i32>} : memref<8x128xf32, #tpu.memory_space<vmem>>, vector<8x128xf32>,
    } else {
    }
    %3 = arith.index_cast %arg0 : i32 to index
    %4 = memref.load %arg4[%3] : memref<1xi32, #tpu.memory_space<smem>>
    %5 = arith.cmpi slt, %arg1, %4 : i32
    %6 = arith.extui %5 : i1 to i32
    %c0_i32_1 = arith.constant 0 : i32
    %7 = arith.cmpi ne, %6, %c0_i32_1 : i32
    scf.if %7 {
      %c0 = arith.constant 0 : index
      %c0_3 = arith.constant 0 : index
      %11 = vector.load %arg16[%c0, %c0_3] : memref<8x128xf32, #tpu.memory_space<vmem>>, vector<8x128xf32>
      %c0_4 = arith.constant 0 : index
      %c0_5 = arith.constant 0 : index
      %12 = vector.load %arg5[%c0_4, %c0_5] : memref<8x128xf32, #tpu.memory_space<vmem>>, vector<8x128xf32>
      %13 = arith.truncf %12 : vector<8x128xf32> to vector<8x128xbf16>
      %c0_6 = arith.constant 0 : index
      %c0_7 = arith.constant 0 : index
      %c0_8 = arith.constant 0 : index
      %14 = vector.load %arg6[%c0_6, %c0_7, %c0_8] : memref<1x128x128xbf16, #tpu.memory_space<vmem>>, vector<1x128x128xbf16>
      %15 = vector.shape_cast %14 : vector<1x128x128xbf16> to vector<128x128xbf16>
      %cst = arith.constant dense<0.000000e+00> : vector<8x128xf32>
      %16 = tpu.matmul %13, %15, %cst {dimension_numbers = #tpu.dot_dimension_numbers<[1], [0], [0], [1], [0, 0, 1, 1], [], []>} : vector<8x128xbf16>, vector<128x128xbf16>, vector<8x128xf32> -> vector<8x128xf32>
      %17 = arith.addf %11, %16 : vector<8x128xf32>
      %c0_9 = arith.constant 0 : index
      %c0_10 = arith.constant 0 : index
      %18 = vector.load %arg16[%c0_9, %c0_10] : memref<8x128xf32, #tpu.memory_space<vmem>>, vector<8x128xf32>
      tpu.vector_store %arg16[%c0_9, %c0_10], %17 {strides = array<i32>} : memref<8x128xf32, #tpu.memory_space<vmem>>, vector<8x128xf32>,
    } else {
    }
    %c1_i32 = arith.constant 1 : i32
    %8 = arith.cmpi eq, %arg1, %c1_i32 : i32
    %9 = arith.extui %8 : i1 to i32
    %c0_i32_2 = arith.constant 0 : i32
    %10 = arith.cmpi ne, %9, %c0_i32_2 : i32
    scf.if %10 {
      %c0 = arith.constant 0 : index
      %c0_3 = arith.constant 0 : index
      %11 = vector.load %arg16[%c0, %c0_3] : memref<8x128xf32, #tpu.memory_space<vmem>>, vector<8x128xf32>
      %c0_4 = arith.constant 0 : index
      %c0_5 = arith.constant 0 : index
      %12 = vector.load %arg7[%c0_4, %c0_5] : memref<1x128xf32, #tpu.memory_space<vmem>>, vector<1x128xf32>
      %13 = vector.broadcast %12 : vector<1x128xf32> to vector<8x128xf32>
      %14 = arith.addf %11, %13 : vector<8x128xf32>
      %15 = math.tanh %14 : vector<8x128xf32>
      %16 = tpu.iota {dimensions = array<i32: 0>} : vector<8x128xi32>
      %c6_i32 = arith.constant 6 : i32
      %17 = vector.broadcast %c6_i32 : i32 to vector<8x128xi32>
      %18 = arith.cmpi slt, %16, %17 : vector<8x128xi32>
      %19 = arith.extui %18 : vector<8x128xi1> to vector<8x128xi32>
      %20 = arith.sitofp %19 : vector<8x128xi32> to vector<8x128xf32>
      %21 = arith.mulf %15, %20 : vector<8x128xf32>
      %cst = arith.constant dense<0.000000e+00> : vector<128xf32>
      %22 = vector.multi_reduction <add>, %21, %cst [0] : vector<8x128xf32> to vector<128xf32>
      %23 = vector.shape_cast %22 : vector<128xf32> to vector<1x128xf32>
      %cst_6 = arith.constant 0.166666672 : f32
      %24 = vector.broadcast %cst_6 : f32 to vector<1x128xf32>
      %25 = arith.mulf %23, %24 : vector<1x128xf32>
      %26 = vector.broadcast %25 : vector<1x128xf32> to vector<8x128xf32>
      %27 = arith.subf %15, %26 : vector<8x128xf32>
      %28 = arith.mulf %27, %20 : vector<8x128xf32>
      %29 = arith.mulf %28, %28 : vector<8x128xf32>
      %cst_7 = arith.constant dense<0.000000e+00> : vector<128xf32>
      %30 = vector.multi_reduction <add>, %29, %cst_7 [0] : vector<8x128xf32> to vector<128xf32>
      %31 = vector.shape_cast %30 : vector<128xf32> to vector<1x128xf32>
      %cst_8 = arith.constant 0.166666672 : f32
      %32 = vector.broadcast %cst_8 : f32 to vector<1x128xf32>
      %33 = arith.mulf %31, %32 : vector<1x128xf32>
      %34 = vector.broadcast %25 : vector<1x128xf32> to vector<8x128xf32>
      %35 = arith.subf %15, %34 : vector<8x128xf32>
      %cst_9 = arith.constant 9.99999974E-6 : f32
      %36 = vector.broadcast %cst_9 : f32 to vector<1x128xf32>
      %37 = arith.addf %33, %36 : vector<1x128xf32>
      %38 = math.rsqrt %37 : vector<1x128xf32>
      %39 = vector.broadcast %38 : vector<1x128xf32> to vector<8x128xf32>
      %40 = arith.mulf %35, %39 : vector<8x128xf32>
      %c0_10 = arith.constant 0 : index
      %c0_11 = arith.constant 0 : index
      %41 = vector.load %arg8[%c0_10, %c0_11] : memref<1x128xf32, #tpu.memory_space<vmem>>, vector<1x128xf32>
      %42 = vector.broadcast %41 : vector<1x128xf32> to vector<8x128xf32>
      %43 = arith.mulf %40, %42 : vector<8x128xf32>
      %c0_12 = arith.constant 0 : index
      %c0_13 = arith.constant 0 : index
      %44 = vector.load %arg9[%c0_12, %c0_13] : memref<1x128xf32, #tpu.memory_space<vmem>>, vector<1x128xf32>
      %45 = vector.broadcast %44 : vector<1x128xf32> to vector<8x128xf32>
      %46 = arith.addf %43, %45 : vector<8x128xf32>
      %47 = arith.mulf %46, %20 : vector<8x128xf32>
      %c0_14 = arith.constant 0 : index
      %c0_15 = arith.constant 0 : index
      %48 = vector.load %arg14[%c0_14, %c0_15] : memref<8x128xf32, #tpu.memory_space<vmem>>, vector<8x128xf32>
      tpu.vector_store %arg14[%c0_14, %c0_15], %47 {strides = array<i32>} : memref<8x128xf32, #tpu.memory_space<vmem>>, vector<8x128xf32>,
      %49 = arith.truncf %47 : vector<8x128xf32> to vector<8x128xbf16>
      %c0_16 = arith.constant 0 : index
      %c0_17 = arith.constant 0 : index
      %50 = vector.load %arg10[%c0_16, %c0_17] : memref<128x128xbf16, #tpu.memory_space<vmem>>, vector<128x128xbf16>
      %cst_18 = arith.constant dense<0.000000e+00> : vector<8x128xf32>
      %51 = tpu.matmul %49, %50, %cst_18 {dimension_numbers = #tpu.dot_dimension_numbers<[1], [0], [0], [1], [0, 0, 1, 1], [], []>} : vector<8x128xbf16>, vector<128x128xbf16>, vector<8x128xf32> -> vector<8x128xf32>
      %c0_19 = arith.constant 0 : index
      %c0_20 = arith.constant 0 : index
      %52 = vector.load %arg11[%c0_19, %c0_20] : memref<1x128xf32, #tpu.memory_space<vmem>>, vector<1x128xf32>
      %53 = vector.broadcast %52 : vector<1x128xf32> to vector<8x128xf32>
      %54 = arith.addf %51, %53 : vector<8x128xf32>
      %55 = math.tanh %54 : vector<8x128xf32>
      %c0_21 = arith.constant 0 : index
      %c0_22 = arith.constant 0 : index
      %56 = vector.load %arg12[%c0_21, %c0_22] : memref<1x128xf32, #tpu.memory_space<vmem>>, vector<1x128xf32>
      %57 = vector.broadcast %56 : vector<1x128xf32> to vector<8x128xf32>
      %58 = arith.mulf %55, %57 : vector<8x128xf32>
      %c0_23 = arith.constant 0 : index
      %c0_24 = arith.constant 0 : index
      %59 = vector.load %arg13[%c0_23, %c0_24] : memref<1x128xf32, #tpu.memory_space<vmem>>, vector<1x128xf32>
      %60 = vector.broadcast %59 : vector<1x128xf32> to vector<8x128xf32>
      %61 = arith.addf %58, %60 : vector<8x128xf32>
      %c0_25 = arith.constant 0 : index
      %c0_26 = arith.constant 0 : index
      %62 = vector.load %arg15[%c0_25, %c0_26] : memref<8x128xf32, #tpu.memory_space<vmem>>, vector<8x128xf32>
      tpu.vector_store %arg15[%c0_25, %c0_26], %61 {strides = array<i32>} : memref<8x128xf32, #tpu.memory_space<vmem>>, vector<8x128xf32>,
    } else {
    }
    return
  }
  func.func @transform_0(%arg0: i32, %arg1: i32, %arg2: memref<2xi32, #tpu.memory_space<smem>>, %arg3: memref<2xi32, #tpu.memory_space<smem>>, %arg4: memref<1xi32, #tpu.memory_space<smem>>) -> (i32, i32) {
    %c2_i32 = arith.constant 2 : i32
    %0 = arith.muli %arg0, %c2_i32 : i32
    %1 = arith.addi %0, %arg1 : i32
    %2 = arith.index_cast %1 : i32 to index
    %3 = memref.load %arg2[%2] : memref<2xi32, #tpu.memory_space<smem>>
    %c0_i32 = arith.constant 0 : i32
    %c0_i32_0 = arith.constant 0 : i32
    return %c0_i32, %3 : i32, i32
  }
  func.func @transform_1(%arg0: i32, %arg1: i32, %arg2: memref<2xi32, #tpu.memory_space<smem>>, %arg3: memref<2xi32, #tpu.memory_space<smem>>, %arg4: memref<1xi32, #tpu.memory_space<smem>>) -> (i32, i32, i32) {
    %c2_i32 = arith.constant 2 : i32
    %0 = arith.muli %arg0, %c2_i32 : i32
    %1 = arith.addi %0, %arg1 : i32
    %2 = arith.index_cast %1 : i32 to index
    %3 = memref.load %arg3[%2] : memref<2xi32, #tpu.memory_space<smem>>
    %c0_i32 = arith.constant 0 : i32
    %c0_i32_0 = arith.constant 0 : i32
    %c0_i32_1 = arith.constant 0 : i32
    return %3, %c0_i32, %c0_i32_0 : i32, i32, i32
  }
  func.func @transform_2(%arg0: i32, %arg1: i32, %arg2: memref<2xi32, #tpu.memory_space<smem>>, %arg3: memref<2xi32, #tpu.memory_space<smem>>, %arg4: memref<1xi32, #tpu.memory_space<smem>>) -> (i32, i32) {
    %c0_i32 = arith.constant 0 : i32
    %c0_i32_0 = arith.constant 0 : i32
    return %c0_i32, %arg0 : i32, i32
  }
  func.func @transform_3(%arg0: i32, %arg1: i32, %arg2: memref<2xi32, #tpu.memory_space<smem>>, %arg3: memref<2xi32, #tpu.memory_space<smem>>, %arg4: memref<1xi32, #tpu.memory_space<smem>>) -> (i32, i32) {
    %c0_i32 = arith.constant 0 : i32
    %c0_i32_0 = arith.constant 0 : i32
    return %c0_i32, %arg0 : i32, i32
  }
  func.func @transform_4(%arg0: i32, %arg1: i32, %arg2: memref<2xi32, #tpu.memory_space<smem>>, %arg3: memref<2xi32, #tpu.memory_space<smem>>, %arg4: memref<1xi32, #tpu.memory_space<smem>>) -> (i32, i32) {
    %c0_i32 = arith.constant 0 : i32
    %c0_i32_0 = arith.constant 0 : i32
    return %c0_i32, %arg0 : i32, i32
  }
  func.func @transform_5(%arg0: i32, %arg1: i32, %arg2: memref<2xi32, #tpu.memory_space<smem>>, %arg3: memref<2xi32, #tpu.memory_space<smem>>, %arg4: memref<1xi32, #tpu.memory_space<smem>>) -> (i32, i32) {
    %c0_i32 = arith.constant 0 : i32
    %c0_i32_0 = arith.constant 0 : i32
    return %arg0, %c0_i32 : i32, i32
  }
  func.func @transform_6(%arg0: i32, %arg1: i32, %arg2: memref<2xi32, #tpu.memory_space<smem>>, %arg3: memref<2xi32, #tpu.memory_space<smem>>, %arg4: memref<1xi32, #tpu.memory_space<smem>>) -> (i32, i32) {
    %c0_i32 = arith.constant 0 : i32
    %c0_i32_0 = arith.constant 0 : i32
    return %c0_i32, %arg0 : i32, i32
  }
  func.func @transform_7(%arg0: i32, %arg1: i32, %arg2: memref<2xi32, #tpu.memory_space<smem>>, %arg3: memref<2xi32, #tpu.memory_space<smem>>, %arg4: memref<1xi32, #tpu.memory_space<smem>>) -> (i32, i32) {
    %c0_i32 = arith.constant 0 : i32
    %c0_i32_0 = arith.constant 0 : i32
    return %c0_i32, %arg0 : i32, i32
  }
  func.func @transform_8(%arg0: i32, %arg1: i32, %arg2: memref<2xi32, #tpu.memory_space<smem>>, %arg3: memref<2xi32, #tpu.memory_space<smem>>, %arg4: memref<1xi32, #tpu.memory_space<smem>>) -> (i32, i32) {
    %c0_i32 = arith.constant 0 : i32
    %c0_i32_0 = arith.constant 0 : i32
    return %c0_i32, %arg0 : i32, i32
  }
  func.func @transform_9(%arg0: i32, %arg1: i32, %arg2: memref<2xi32, #tpu.memory_space<smem>>, %arg3: memref<2xi32, #tpu.memory_space<smem>>, %arg4: memref<1xi32, #tpu.memory_space<smem>>) -> (i32, i32) {
    %c0_i32 = arith.constant 0 : i32
    %c0_i32_0 = arith.constant 0 : i32
    return %c0_i32, %arg0 : i32, i32
  }
  func.func @transform_10(%arg0: i32, %arg1: i32, %arg2: memref<2xi32, #tpu.memory_space<smem>>, %arg3: memref<2xi32, #tpu.memory_space<smem>>, %arg4: memref<1xi32, #tpu.memory_space<smem>>) -> (i32, i32) {
    %c0_i32 = arith.constant 0 : i32
    %c0_i32_0 = arith.constant 0 : i32
    return %c0_i32, %arg0 : i32, i32
  }
}

module attributes {stable_mosaic.version = 11 : i64} {
  func.func @layer_kernel(%arg0: i32, %arg1: i32, %arg2: memref<1xi32, #tpu.memory_space<smem>>, %arg3: memref<1xi32, #tpu.memory_space<smem>>, %arg4: memref<1xi32, #tpu.memory_space<smem>>, %arg5: memref<8x128xf32, #tpu.memory_space<vmem>>, %arg6: memref<1x128x128xbf16, #tpu.memory_space<vmem>>, %arg7: memref<1x128xf32, #tpu.memory_space<vmem>>, %arg8: memref<1x128xf32, #tpu.memory_space<vmem>>, %arg9: memref<1x128xf32, #tpu.memory_space<vmem>>, %arg10: memref<128x128xbf16, #tpu.memory_space<vmem>>, %arg11: memref<1x128xf32, #tpu.memory_space<vmem>>, %arg12: memref<1x128xf32, #tpu.memory_space<vmem>>, %arg13: memref<1x128xf32, #tpu.memory_space<vmem>>, %arg14: memref<8x128xf32, #tpu.memory_space<vmem>>, %arg15: memref<8x128xf32, #tpu.memory_space<vmem>>, %arg16: memref<8x128xf32, #tpu.memory_space<vmem>>) attributes {dimension_semantics = [#tpu.dimension_semantics<parallel>, #tpu.dimension_semantics<arbitrary>], iteration_bounds = array<i64: 1, 1>, scalar_prefetch = 3 : i64, scratch_operands = 1 : i64, tpu.core_type = #tpu.core_type<tc>, window_params = [{transform_indices = @transform_0, window_bounds = array<i64: 8, 128>}, {transform_indices = @transform_1, window_bounds = array<i64: 1, 128, 128>}, {transform_indices = @transform_2, window_bounds = array<i64: 1, 128>}, {transform_indices = @transform_3, window_bounds = array<i64: 1, 128>}, {transform_indices = @transform_4, window_bounds = array<i64: 1, 128>}, {transform_indices = @transform_5, window_bounds = array<i64: 128, 128>}, {transform_indices = @transform_6, window_bounds = array<i64: 1, 128>}, {transform_indices = @transform_7, window_bounds = array<i64: 1, 128>}, {transform_indices = @transform_8, window_bounds = array<i64: 1, 128>}, {transform_indices = @transform_9, window_bounds = array<i64: 8, 128>}, {transform_indices = @transform_10, window_bounds = array<i64: 8, 128>}]} {
    %c0_i32 = arith.constant 0 : i32
    %0 = arith.cmpi eq, %arg1, %c0_i32 : i32
    %1 = arith.extui %0 : i1 to i32
    %c0_i32_0 = arith.constant 0 : i32
    %2 = arith.cmpi ne, %1, %c0_i32_0 : i32
    scf.if %2 {
      %cst = arith.constant 0.000000e+00 : f32
      %11 = vector.broadcast %cst : f32 to vector<8x128xf32>
      %c0 = arith.constant 0 : index
      %c0_4 = arith.constant 0 : index
      %12 = vector.load %arg16[%c0, %c0_4] : memref<8x128xf32, #tpu.memory_space<vmem>>, vector<8x128xf32>
      tpu.vector_store %arg16[%c0, %c0_4], %11 {strides = array<i32>} : memref<8x128xf32, #tpu.memory_space<vmem>>, vector<8x128xf32>,
    } else {
    }
    %3 = arith.index_cast %arg0 : i32 to index
    %4 = memref.load %arg4[%3] : memref<1xi32, #tpu.memory_space<smem>>
    %5 = arith.cmpi slt, %arg1, %4 : i32
    %6 = arith.extui %5 : i1 to i32
    %c0_i32_1 = arith.constant 0 : i32
    %7 = arith.cmpi ne, %6, %c0_i32_1 : i32
    scf.if %7 {
      %c0 = arith.constant 0 : index
      %c0_4 = arith.constant 0 : index
      %11 = vector.load %arg16[%c0, %c0_4] : memref<8x128xf32, #tpu.memory_space<vmem>>, vector<8x128xf32>
      %c0_5 = arith.constant 0 : index
      %c0_6 = arith.constant 0 : index
      %12 = vector.load %arg5[%c0_5, %c0_6] : memref<8x128xf32, #tpu.memory_space<vmem>>, vector<8x128xf32>
      %13 = arith.truncf %12 : vector<8x128xf32> to vector<8x128xbf16>
      %c0_7 = arith.constant 0 : index
      %c0_8 = arith.constant 0 : index
      %c0_9 = arith.constant 0 : index
      %14 = vector.load %arg6[%c0_7, %c0_8, %c0_9] : memref<1x128x128xbf16, #tpu.memory_space<vmem>>, vector<1x128x128xbf16>
      %15 = vector.shape_cast %14 : vector<1x128x128xbf16> to vector<128x128xbf16>
      %cst = arith.constant dense<0.000000e+00> : vector<8x128xf32>
      %16 = tpu.matmul %13, %15, %cst {dimension_numbers = #tpu.dot_dimension_numbers<[1], [0], [0], [1], [0, 0, 1, 1], [], []>} : vector<8x128xbf16>, vector<128x128xbf16>, vector<8x128xf32> -> vector<8x128xf32>
      %17 = arith.addf %11, %16 : vector<8x128xf32>
      %c0_10 = arith.constant 0 : index
      %c0_11 = arith.constant 0 : index
      %18 = vector.load %arg16[%c0_10, %c0_11] : memref<8x128xf32, #tpu.memory_space<vmem>>, vector<8x128xf32>
      tpu.vector_store %arg16[%c0_10, %c0_11], %17 {strides = array<i32>} : memref<8x128xf32, #tpu.memory_space<vmem>>, vector<8x128xf32>,
    } else {
    }
    %c0_i32_2 = arith.constant 0 : i32
    %8 = arith.cmpi eq, %arg1, %c0_i32_2 : i32
    %9 = arith.extui %8 : i1 to i32
    %c0_i32_3 = arith.constant 0 : i32
    %10 = arith.cmpi ne, %9, %c0_i32_3 : i32
    scf.if %10 {
      %c0 = arith.constant 0 : index
      %c0_4 = arith.constant 0 : index
      %11 = vector.load %arg16[%c0, %c0_4] : memref<8x128xf32, #tpu.memory_space<vmem>>, vector<8x128xf32>
      %c0_5 = arith.constant 0 : index
      %c0_6 = arith.constant 0 : index
      %12 = vector.load %arg7[%c0_5, %c0_6] : memref<1x128xf32, #tpu.memory_space<vmem>>, vector<1x128xf32>
      %13 = vector.broadcast %12 : vector<1x128xf32> to vector<8x128xf32>
      %14 = arith.addf %11, %13 : vector<8x128xf32>
      %15 = math.tanh %14 : vector<8x128xf32>
      %16 = tpu.iota {dimensions = array<i32: 0>} : vector<8x128xi32>
      %c6_i32 = arith.constant 6 : i32
      %17 = vector.broadcast %c6_i32 : i32 to vector<8x128xi32>
      %18 = arith.cmpi slt, %16, %17 : vector<8x128xi32>
      %19 = arith.extui %18 : vector<8x128xi1> to vector<8x128xi32>
      %20 = arith.sitofp %19 : vector<8x128xi32> to vector<8x128xf32>
      %21 = arith.mulf %15, %20 : vector<8x128xf32>
      %cst = arith.constant dense<0.000000e+00> : vector<128xf32>
      %22 = vector.multi_reduction <add>, %21, %cst [0] : vector<8x128xf32> to vector<128xf32>
      %23 = vector.shape_cast %22 : vector<128xf32> to vector<1x128xf32>
      %cst_7 = arith.constant 0.166666672 : f32
      %24 = vector.broadcast %cst_7 : f32 to vector<1x128xf32>
      %25 = arith.mulf %23, %24 : vector<1x128xf32>
      %26 = vector.broadcast %25 : vector<1x128xf32> to vector<8x128xf32>
      %27 = arith.subf %15, %26 : vector<8x128xf32>
      %28 = arith.mulf %27, %20 : vector<8x128xf32>
      %29 = arith.mulf %28, %28 : vector<8x128xf32>
      %cst_8 = arith.constant dense<0.000000e+00> : vector<128xf32>
      %30 = vector.multi_reduction <add>, %29, %cst_8 [0] : vector<8x128xf32> to vector<128xf32>
      %31 = vector.shape_cast %30 : vector<128xf32> to vector<1x128xf32>
      %cst_9 = arith.constant 0.166666672 : f32
      %32 = vector.broadcast %cst_9 : f32 to vector<1x128xf32>
      %33 = arith.mulf %31, %32 : vector<1x128xf32>
      %34 = vector.broadcast %25 : vector<1x128xf32> to vector<8x128xf32>
      %35 = arith.subf %15, %34 : vector<8x128xf32>
      %cst_10 = arith.constant 9.99999974E-6 : f32
      %36 = vector.broadcast %cst_10 : f32 to vector<1x128xf32>
      %37 = arith.addf %33, %36 : vector<1x128xf32>
      %38 = math.rsqrt %37 : vector<1x128xf32>
      %39 = vector.broadcast %38 : vector<1x128xf32> to vector<8x128xf32>
      %40 = arith.mulf %35, %39 : vector<8x128xf32>
      %c0_11 = arith.constant 0 : index
      %c0_12 = arith.constant 0 : index
      %41 = vector.load %arg8[%c0_11, %c0_12] : memref<1x128xf32, #tpu.memory_space<vmem>>, vector<1x128xf32>
      %42 = vector.broadcast %41 : vector<1x128xf32> to vector<8x128xf32>
      %43 = arith.mulf %40, %42 : vector<8x128xf32>
      %c0_13 = arith.constant 0 : index
      %c0_14 = arith.constant 0 : index
      %44 = vector.load %arg9[%c0_13, %c0_14] : memref<1x128xf32, #tpu.memory_space<vmem>>, vector<1x128xf32>
      %45 = vector.broadcast %44 : vector<1x128xf32> to vector<8x128xf32>
      %46 = arith.addf %43, %45 : vector<8x128xf32>
      %47 = arith.mulf %46, %20 : vector<8x128xf32>
      %c0_15 = arith.constant 0 : index
      %c0_16 = arith.constant 0 : index
      %48 = vector.load %arg14[%c0_15, %c0_16] : memref<8x128xf32, #tpu.memory_space<vmem>>, vector<8x128xf32>
      tpu.vector_store %arg14[%c0_15, %c0_16], %47 {strides = array<i32>} : memref<8x128xf32, #tpu.memory_space<vmem>>, vector<8x128xf32>,
      %49 = arith.truncf %47 : vector<8x128xf32> to vector<8x128xbf16>
      %c0_17 = arith.constant 0 : index
      %c0_18 = arith.constant 0 : index
      %50 = vector.load %arg10[%c0_17, %c0_18] : memref<128x128xbf16, #tpu.memory_space<vmem>>, vector<128x128xbf16>
      %cst_19 = arith.constant dense<0.000000e+00> : vector<8x128xf32>
      %51 = tpu.matmul %49, %50, %cst_19 {dimension_numbers = #tpu.dot_dimension_numbers<[1], [0], [0], [1], [0, 0, 1, 1], [], []>} : vector<8x128xbf16>, vector<128x128xbf16>, vector<8x128xf32> -> vector<8x128xf32>
      %c0_20 = arith.constant 0 : index
      %c0_21 = arith.constant 0 : index
      %52 = vector.load %arg11[%c0_20, %c0_21] : memref<1x128xf32, #tpu.memory_space<vmem>>, vector<1x128xf32>
      %53 = vector.broadcast %52 : vector<1x128xf32> to vector<8x128xf32>
      %54 = arith.addf %51, %53 : vector<8x128xf32>
      %55 = math.tanh %54 : vector<8x128xf32>
      %c0_22 = arith.constant 0 : index
      %c0_23 = arith.constant 0 : index
      %56 = vector.load %arg12[%c0_22, %c0_23] : memref<1x128xf32, #tpu.memory_space<vmem>>, vector<1x128xf32>
      %57 = vector.broadcast %56 : vector<1x128xf32> to vector<8x128xf32>
      %58 = arith.mulf %55, %57 : vector<8x128xf32>
      %c0_24 = arith.constant 0 : index
      %c0_25 = arith.constant 0 : index
      %59 = vector.load %arg13[%c0_24, %c0_25] : memref<1x128xf32, #tpu.memory_space<vmem>>, vector<1x128xf32>
      %60 = vector.broadcast %59 : vector<1x128xf32> to vector<8x128xf32>
      %61 = arith.addf %58, %60 : vector<8x128xf32>
      %62 = arith.negf %61 : vector<8x128xf32>
      %63 = math.exp %62 : vector<8x128xf32>
      %cst_26 = arith.constant 1.000000e+00 : f32
      %64 = vector.broadcast %cst_26 : f32 to vector<8x128xf32>
      %65 = arith.addf %64, %63 : vector<8x128xf32>
      %66 = arith.divf %64, %65 : vector<8x128xf32>
      %c0_27 = arith.constant 0 : index
      %c0_28 = arith.constant 0 : index
      %67 = vector.load %arg15[%c0_27, %c0_28] : memref<8x128xf32, #tpu.memory_space<vmem>>, vector<8x128xf32>
      tpu.vector_store %arg15[%c0_27, %c0_28], %66 {strides = array<i32>} : memref<8x128xf32, #tpu.memory_space<vmem>>, vector<8x128xf32>,
    } else {
    }
    return
  }
  func.func @transform_0(%arg0: i32, %arg1: i32, %arg2: memref<1xi32, #tpu.memory_space<smem>>, %arg3: memref<1xi32, #tpu.memory_space<smem>>, %arg4: memref<1xi32, #tpu.memory_space<smem>>) -> (i32, i32) {
    %c1_i32 = arith.constant 1 : i32
    %0 = arith.muli %arg0, %c1_i32 : i32
    %1 = arith.addi %0, %arg1 : i32
    %2 = arith.index_cast %1 : i32 to index
    %3 = memref.load %arg2[%2] : memref<1xi32, #tpu.memory_space<smem>>
    %c0_i32 = arith.constant 0 : i32
    %c0_i32_0 = arith.constant 0 : i32
    return %c0_i32, %3 : i32, i32
  }
  func.func @transform_1(%arg0: i32, %arg1: i32, %arg2: memref<1xi32, #tpu.memory_space<smem>>, %arg3: memref<1xi32, #tpu.memory_space<smem>>, %arg4: memref<1xi32, #tpu.memory_space<smem>>) -> (i32, i32, i32) {
    %c1_i32 = arith.constant 1 : i32
    %0 = arith.muli %arg0, %c1_i32 : i32
    %1 = arith.addi %0, %arg1 : i32
    %2 = arith.index_cast %1 : i32 to index
    %3 = memref.load %arg3[%2] : memref<1xi32, #tpu.memory_space<smem>>
    %c0_i32 = arith.constant 0 : i32
    %c0_i32_0 = arith.constant 0 : i32
    %c0_i32_1 = arith.constant 0 : i32
    return %3, %c0_i32, %c0_i32_0 : i32, i32, i32
  }
  func.func @transform_2(%arg0: i32, %arg1: i32, %arg2: memref<1xi32, #tpu.memory_space<smem>>, %arg3: memref<1xi32, #tpu.memory_space<smem>>, %arg4: memref<1xi32, #tpu.memory_space<smem>>) -> (i32, i32) {
    %c0_i32 = arith.constant 0 : i32
    %c0_i32_0 = arith.constant 0 : i32
    return %c0_i32, %arg0 : i32, i32
  }
  func.func @transform_3(%arg0: i32, %arg1: i32, %arg2: memref<1xi32, #tpu.memory_space<smem>>, %arg3: memref<1xi32, #tpu.memory_space<smem>>, %arg4: memref<1xi32, #tpu.memory_space<smem>>) -> (i32, i32) {
    %c0_i32 = arith.constant 0 : i32
    %c0_i32_0 = arith.constant 0 : i32
    return %c0_i32, %arg0 : i32, i32
  }
  func.func @transform_4(%arg0: i32, %arg1: i32, %arg2: memref<1xi32, #tpu.memory_space<smem>>, %arg3: memref<1xi32, #tpu.memory_space<smem>>, %arg4: memref<1xi32, #tpu.memory_space<smem>>) -> (i32, i32) {
    %c0_i32 = arith.constant 0 : i32
    %c0_i32_0 = arith.constant 0 : i32
    return %c0_i32, %arg0 : i32, i32
  }
  func.func @transform_5(%arg0: i32, %arg1: i32, %arg2: memref<1xi32, #tpu.memory_space<smem>>, %arg3: memref<1xi32, #tpu.memory_space<smem>>, %arg4: memref<1xi32, #tpu.memory_space<smem>>) -> (i32, i32) {
    %c0_i32 = arith.constant 0 : i32
    %c0_i32_0 = arith.constant 0 : i32
    return %arg0, %c0_i32 : i32, i32
  }
  func.func @transform_6(%arg0: i32, %arg1: i32, %arg2: memref<1xi32, #tpu.memory_space<smem>>, %arg3: memref<1xi32, #tpu.memory_space<smem>>, %arg4: memref<1xi32, #tpu.memory_space<smem>>) -> (i32, i32) {
    %c0_i32 = arith.constant 0 : i32
    %c0_i32_0 = arith.constant 0 : i32
    return %c0_i32, %arg0 : i32, i32
  }
  func.func @transform_7(%arg0: i32, %arg1: i32, %arg2: memref<1xi32, #tpu.memory_space<smem>>, %arg3: memref<1xi32, #tpu.memory_space<smem>>, %arg4: memref<1xi32, #tpu.memory_space<smem>>) -> (i32, i32) {
    %c0_i32 = arith.constant 0 : i32
    %c0_i32_0 = arith.constant 0 : i32
    return %c0_i32, %arg0 : i32, i32
  }
  func.func @transform_8(%arg0: i32, %arg1: i32, %arg2: memref<1xi32, #tpu.memory_space<smem>>, %arg3: memref<1xi32, #tpu.memory_space<smem>>, %arg4: memref<1xi32, #tpu.memory_space<smem>>) -> (i32, i32) {
    %c0_i32 = arith.constant 0 : i32
    %c0_i32_0 = arith.constant 0 : i32
    return %c0_i32, %arg0 : i32, i32
  }
  func.func @transform_9(%arg0: i32, %arg1: i32, %arg2: memref<1xi32, #tpu.memory_space<smem>>, %arg3: memref<1xi32, #tpu.memory_space<smem>>, %arg4: memref<1xi32, #tpu.memory_space<smem>>) -> (i32, i32) {
    %c0_i32 = arith.constant 0 : i32
    %c0_i32_0 = arith.constant 0 : i32
    return %c0_i32, %arg0 : i32, i32
  }
  func.func @transform_10(%arg0: i32, %arg1: i32, %arg2: memref<1xi32, #tpu.memory_space<smem>>, %arg3: memref<1xi32, #tpu.memory_space<smem>>, %arg4: memref<1xi32, #tpu.memory_space<smem>>) -> (i32, i32) {
    %c0_i32 = arith.constant 0 : i32
    %c0_i32_0 = arith.constant 0 : i32
    return %c0_i32, %arg0 : i32, i32
  }
}

</mosaic_0001>

<llo_original>
// kernel: forward.5
$region0: #{forward.5}
  #allocation0 [shape = 'u32[]', space=smem, size = 0x4, offset = 0x4, fixed_abs, tag = 'smem constant byte address 0x4 - core index']
  #allocation1 [shape = 'u32[144,128]{1,0:T(1,128)}', space=vmem, size = 0x12000, scoped, tag = 'internal scratch']
  #allocation2 [shape = 'f32[8,128]{1,0:T(8,128)}', space=vmem, size = 0x1000, scoped, tag = 'scratch operand']
  %s0 = inlined_call_operand.vmem [shape: f32[8,128], index: 0, kind: input, shape index: {}]
  %s1 = inlined_call_operand.vmem [shape: bf16[128,128], index: 1, kind: input, shape index: {}]
  %s2 = inlined_call_operand.vmem [shape: f32[1,128], index: 2, kind: input, shape index: {}]
  %s3 = inlined_call_operand.vmem [shape: f32[8,128], index: 3, kind: output, shape index: {}]
  %s4 = sld [smem:[#allocation0]]
  $region30: #{forward.5} parent=0
    _
  %s6 = ssub.s32 1, %s4
  %s7 = scalar_select 0, %s6, %s4
  // Predicated region
  $region2: #{forward.5} parent=0 // pred_check
    _
  $region3: #{forward.5} parent=0 // pred_check_branch
    %9 = sbr.rel (0) target = $region5
  $region4: #{forward.5} parent=0 // pred_region
    _
  $region5: #{forward.5} parent=0 // pred_fallthru
    _
  // Predicated region
  $region6: #{forward.5} parent=0 // pred_check
    _
  $region7: #{forward.5} parent=0 // pred_check_branch
    %11 = sbr.rel (0) target = $region9
  $region8: #{forward.5} parent=0 // pred_region
    _
  $region9: #{forward.5} parent=0 // pred_fallthru
    _
  // Predicated region
  $region10: #{forward.5} parent=0 // pred_check
    _
  $region11: #{forward.5} parent=0 // pred_check_branch
    %13 = sbr.rel (0) target = $region13
  $region12: #{forward.5} parent=0 // pred_region
    _
  $region13: #{forward.5} parent=0 // pred_fallthru
    _
  %p15 = scmp.eq.s32.totalorder 0, 0
  // Predicated region
  $region14: #{forward.5} parent=0 // pred_check
    %p16 = pneg %p15
  $region15: #{forward.5} parent=0 // pred_check_branch
    %18 = sbr.rel (%p16) target = $region17
  $region16: #{forward.5} parent=0 // pred_region
    %19 = vst [vmem:[#allocation2] sm:$0xff] 0.0
  $region17: #{forward.5} parent=0 // pred_fallthru
    _
  %v20 = vld [vmem:[#allocation2] sm:$0xff]
  %v21 = vld [vmem:[%s0] sm:$0xff]
  %v22 = vpack.c.bf16 %v21, %v21
  %v23 = vld [vmem:[%s1] sm:$0xf]
  %v24 = vld [vmem:[%s1 + $0x4] sm:$0xf]
  %v25 = vld [vmem:[%s1 + $0x8] sm:$0xf]
  %v26 = vld [vmem:[%s1 + $0xc] sm:$0xf]
  %v27 = vld [vmem:[%s1 + $0x10] sm:$0xf]
  %v28 = vld [vmem:[%s1 + $0x14] sm:$0xf]
  %v29 = vld [vmem:[%s1 + $0x18] sm:$0xf]
  %v30 = vld [vmem:[%s1 + $0x1c] sm:$0xf]
  %v31 = vld [vmem:[%s1 + $0x20] sm:$0xf]
  %v32 = vld [vmem:[%s1 + $0x24] sm:$0xf]
  %v33 = vld [vmem:[%s1 + $0x28] sm:$0xf]
  %v34 = vld [vmem:[%s1 + $0x2c] sm:$0xf]
  %v35 = vld [vmem:[%s1 + $0x30] sm:$0xf]
  %v36 = vld [vmem:[%s1 + $0x34] sm:$0xf]
  %v37 = vld [vmem:[%s1 + $0x38] sm:$0xf]
  %v38 = vld [vmem:[%s1 + $0x3c] sm:$0xf]
  %v55 = vunpack.c.l.b16 %v23
  %v56 = vunpack.c.l.b16 %v24
  %v57 = vunpack.c.l.b16 %v25
  %v58 = vunpack.c.l.b16 %v26
  %v59 = vunpack.c.l.b16 %v27
  %v60 = vunpack.c.l.b16 %v28
  %v61 = vunpack.c.l.b16 %v29
  %v62 = vunpack.c.l.b16 %v30
  %v63 = vunpack.c.l.b16 %v31
  %v64 = vunpack.c.l.b16 %v32
  %v65 = vunpack.c.l.b16 %v33
  %v66 = vunpack.c.l.b16 %v34
  %v67 = vunpack.c.l.b16 %v35
  %v68 = vunpack.c.l.b16 %v36
  %v69 = vunpack.c.l.b16 %v37
  %v70 = vunpack.c.l.b16 %v38
  %v71 = vpack.c.b16 %v56, %v55
  %v72 = vpack.c.b16 %v58, %v57
  %v73 = vpack.c.b16 %v60, %v59
  %v74 = vpack.c.b16 %v62, %v61
  %v75 = vpack.c.b16 %v64, %v63
  %v76 = vpack.c.b16 %v66, %v65
  %v77 = vpack.c.b16 %v68, %v67
  %v78 = vpack.c.b16 %v70, %v69
  %87 = vmatprep.subr.bf16.mxu0 0
  %88 = vmatpush1.bf16.msra.mxu0 %v71
  %89 = vmatprep.subr.bf16.mxu0 0
  %90 = vmatpush1.bf16.msra.mxu0 %v72
  %91 = vmatprep.subr.bf16.mxu0 0
  %92 = vmatpush1.bf16.msra.mxu0 %v73
  %93 = vmatprep.subr.bf16.mxu0 0
  %94 = vmatpush1.bf16.msra.mxu0 %v74
  %95 = vmatprep.subr.bf16.mxu0 0
  %96 = vmatpush1.bf16.msra.mxu0 %v75
  %97 = vmatprep.subr.bf16.mxu0 0
  %98 = vmatpush1.bf16.msra.mxu0 %v76
  %99 = vmatprep.subr.bf16.mxu0 0
  %100 = vmatpush1.bf16.msra.mxu0 %v77
  %101 = vmatprep.subr.bf16.mxu0 0
  %102 = vmatpush1.bf16.msra.mxu0 %v78
  %103 = vmatprep.subr.bf16.mxu0 0
  %104 = vmatpush1.bf16.msra.mxu0 0
  %105 = vmatprep.subr.bf16.mxu0 0
  %106 = vmatpush1.bf16.msra.mxu0 0
  %107 = vmatprep.subr.bf16.mxu0 0
  %108 = vmatpush1.bf16.msra.mxu0 0
  %109 = vmatprep.subr.bf16.mxu0 0
  %110 = vmatpush1.bf16.msra.mxu0 0
  %111 = vmatprep.subr.bf16.mxu0 0
  %112 = vmatpush1.bf16.msra.mxu0 0
  %113 = vmatprep.subr.bf16.mxu0 0
  %114 = vmatpush1.bf16.msra.mxu0 0
  %115 = vmatprep.subr.bf16.mxu0 0
  %116 = vmatpush1.bf16.msra.mxu0 0
  %117 = vmatprep.subr.bf16.mxu0 0
  %118 = vmatpush1.bf16.msra.mxu0 0
  %119 = vmatprep.mubr.bf16.mxu0 0
  %120 = vmatmul.mubr.bf16.gmra.mrb[0].mxu0 %v22
  %v121 = vpop.f32.mrb[0].mxu0
  %v122 = vadd.f32 0.0, %v121
  %v123 = vpop.f32.mrb[0].mxu0
  %v124 = vpop.f32.mrb[0].mxu0
  %v125 = vpop.f32.mrb[0].mxu0
  %126 = vdwg.mxu0
  %v127 = vadd.f32 %v20, %v122
  %128 = vst [vmem:[#allocation2] sm:$0xff] %v127
  // Predicated region
  $region18: #{forward.5} parent=0 // pred_check
    %p129 = pneg %p15
  $region19: #{forward.5} parent=0 // pred_check_branch
    %131 = sbr.rel (%p129) target = $region21
  $region20: #{forward.5} parent=0 // pred_region
    %v132 = vld [vmem:[#allocation2] sm:$0xff]
    %v133 = vld [vmem:[%s2] sm:$0x1]
    %v135 = vlaneseq
    %v136 = vshrl.u32 %v135, 7
    %v137 = vsub.s32 0, %v136
    %v138 = vrot.slane %v133, %v137
    %v140 = vadd.f32 %v132, %v138
    %v141 = vlaneseq
    %v142 = vshrl.u32 %v141, 7
    %vm143 = vcmp.lt.s32.totalorder %v142, 6
    %v144 = vsel %vm143, %v140, 0.0
    %145 = vst [vmem:[%s3] sm:$0xff] %v144
  $region21: #{forward.5} parent=0 // pred_fallthru
    _
  // Predicated region
  $region22: #{forward.5} parent=0 // pred_check
    _
  $region23: #{forward.5} parent=0 // pred_check_branch
    %147 = sbr.rel (0) target = $region25
  $region24: #{forward.5} parent=0 // pred_region
    _
  $region25: #{forward.5} parent=0 // pred_fallthru
    _
  // Predicated region
  $region26: #{forward.5} parent=0 // pred_check
    _
  $region27: #{forward.5} parent=0 // pred_check_branch
    %149 = sbr.rel (0) target = $region29
  $region28: #{forward.5} parent=0 // pred_region
    _
  $region29: #{forward.5} parent=0 // pred_fallthru
    _

// kernel: forward.6
$region0: #{forward.6}
  #allocation0 [shape = 'u32[]', space=smem, size = 0x4, offset = 0x4, fixed_abs, tag = 'smem constant byte address 0x4 - core index']
  #allocation1 [shape = 'u32[144,128]{1,0:T(1,128)}', space=vmem, size = 0x12000, scoped, tag = 'internal scratch']
  #allocation2 [shape = 'f32[8,128]{1,0:T(8,128)}', space=vmem, size = 0x1000, scoped, tag = 'scratch operand']
  #allocation3 [shape = 's32[1]{0}', space=sflag, size = 0x4, scoped, tag = 'scoped memory for forward.6']
  #allocation4 [shape = 's32[1]{0:T(128)S(6)}', space=smem, size = 0x200, scoped, tag = 'prefetched SMEM operand 0']
  #allocation5 [shape = 's32[1]{0:T(128)S(6)}', space=smem, size = 0x200, scoped, tag = 'prefetched SMEM operand 1']
  #allocation6 [shape = 's32[1]{0:T(128)S(6)}', space=smem, size = 0x200, scoped, tag = 'prefetched SMEM operand 2']
  %s0 = inlined_call_operand.<no memory space> [shape: s32[1], index: 0, kind: input, shape index: {}]
  %s1 = inlined_call_operand.<no memory space> [shape: s32[1], index: 1, kind: input, shape index: {}]
  %s2 = inlined_call_operand.<no memory space> [shape: s32[1], index: 2, kind: input, shape index: {}]
  %s3 = inlined_call_operand.vmem [shape: f32[8,512], index: 3, kind: input, shape index: {}]
  %s4 = inlined_call_operand.vmem [shape: bf16[1,128,128], index: 4, kind: input, shape index: {}]
  %s5 = inlined_call_operand.vmem [shape: f32[1,128], index: 5, kind: input, shape index: {}]
  %s6 = inlined_call_operand.vmem [shape: f32[1,128], index: 6, kind: input, shape index: {}]
  %s7 = inlined_call_operand.vmem [shape: f32[1,128], index: 7, kind: input, shape index: {}]
  %s8 = inlined_call_operand.vmem [shape: bf16[128,128], index: 8, kind: input, shape index: {}]
  %s9 = inlined_call_operand.vmem [shape: f32[1,128], index: 9, kind: input, shape index: {}]
  %s10 = inlined_call_operand.vmem [shape: f32[1,128], index: 10, kind: input, shape index: {}]
  %s11 = inlined_call_operand.vmem [shape: f32[1,128], index: 11, kind: input, shape index: {}]
  %s12 = inlined_call_operand.vmem [shape: f32[8,128], index: 12, kind: output, shape index: {0}]
  %s13 = inlined_call_operand.hbm [shape: f32[8,128], index: 13, kind: output, shape index: {1}]
  %14 = xla_tuple %s12, %s13
  %s15 = sld [smem:[#allocation0]]
  $region66: #{forward.6} parent=0
    _
  %s17 = ssub.s32 1, %s15
  %s18 = scalar_select 0, %s17, %s15
  %19 = sst [smem:[#allocation4]] %s0
  %20 = sst [smem:[#allocation5]] %s1
  %21 = sst [smem:[#allocation6]] %s2
  $region1: #{forward.6} parent=0
    #allocation7 [shape = 'u8[4096]{0}', space=vmem, size = 0x1000, scoped, tag = 'output window, operand 1, single buffered']
    #allocation8 [shape = 's32[1]{0}', space=sflag, size = 0x4, scoped, tag = 'scoped memory for forward.6']
    %22 = vsyncpa [#allocation8], 0
    // Predicated region
    $region2: #{forward.6} parent=1 // pred_check
      _
    $region3: #{forward.6} parent=1 // pred_check_branch
      %24 = sbr.rel (0) target = $region5
    $region4: #{forward.6} parent=1 // pred_region
      %s25 = sadd.s32 0, 0
      %s26 = sld [smem:[#allocation4 + %s25]]
      %p27 = scmp.lt.s32.totalorder %s26, 3
      %s28 = scalar_select %p27, %s26, 3
      %s29 = smul.addr %s28, 8
      %s30 = scalar_lea.vmem %s3, %s29
      %s31 = sadd.s32 0, 0
      %s32 = sld [smem:[#allocation4 + %s31]]
    $region5: #{forward.6} parent=1 // pred_fallthru
      _
    // Predicated region
    $region6: #{forward.6} parent=1 // pred_check
      _
    $region7: #{forward.6} parent=1 // pred_check_branch
      %34 = sbr.rel (0) target = $region9
    $region8: #{forward.6} parent=1 // pred_region
      %s35 = sadd.s32 0, 0
      %s36 = sld [smem:[#allocation5 + %s35]]
      %p37 = scmp.lt.s32.totalorder %s36, 0
      %s38 = scalar_select %p37, %s36, 0
      %s39 = smul.addr %s38, 16
      %s40 = smul.addr %s39, 4
      %s41 = scalar_lea.vmem %s4, %s40
      %s42 = sadd.s32 0, 0
      %s43 = sld [smem:[#allocation5 + %s42]]
    $region9: #{forward.6} parent=1 // pred_fallthru
      _
    // Predicated region
    $region10: #{forward.6} parent=1 // pred_check
      _
    $region11: #{forward.6} parent=1 // pred_check_branch
      %45 = sbr.rel (0) target = $region13
    $region12: #{forward.6} parent=1 // pred_region
      _
    $region13: #{forward.6} parent=1 // pred_fallthru
      _
    // Predicated region
    $region14: #{forward.6} parent=1 // pred_check
      _
    $region15: #{forward.6} parent=1 // pred_check_branch
      %47 = sbr.rel (0) target = $region17
    $region16: #{forward.6} parent=1 // pred_region
      _
    $region17: #{forward.6} parent=1 // pred_fallthru
      _
    // Predicated region
    $region18: #{forward.6} parent=1 // pred_check
      _
    $region19: #{forward.6} parent=1 // pred_check_branch
      %49 = sbr.rel (0) target = $region21
    $region20: #{forward.6} parent=1 // pred_region
      _
    $region21: #{forward.6} parent=1 // pred_fallthru
      _
    // Predicated region
    $region22: #{forward.6} parent=1 // pred_check
      _
    $region23: #{forward.6} parent=1 // pred_check_branch
      %51 = sbr.rel (0) target = $region25
    $region24: #{forward.6} parent=1 // pred_region
      _
    $region25: #{forward.6} parent=1 // pred_fallthru
      _
    // Predicated region
    $region26: #{forward.6} parent=1 // pred_check
      _
    $region27: #{forward.6} parent=1 // pred_check_branch
      %53 = sbr.rel (0) target = $region29
    $region28: #{forward.6} parent=1 // pred_region
      _
    $region29: #{forward.6} parent=1 // pred_fallthru
      _
    // Predicated region
    $region30: #{forward.6} parent=1 // pred_check
      _
    $region31: #{forward.6} parent=1 // pred_check_branch
      %55 = sbr.rel (0) target = $region33
    $region32: #{forward.6} parent=1 // pred_region
      _
    $region33: #{forward.6} parent=1 // pred_fallthru
      _
    // Predicated region
    $region34: #{forward.6} parent=1 // pred_check
      _
    $region35: #{forward.6} parent=1 // pred_check_branch
      %57 = sbr.rel (0) target = $region37
    $region36: #{forward.6} parent=1 // pred_region
      _
    $region37: #{forward.6} parent=1 // pred_fallthru
      _
    %s58 = sadd.s32 0, 0
    %s59 = sld [smem:[#allocation4 + %s58]]
    %p60 = scmp.lt.s32.totalorder %s59, 3
    %s61 = scalar_select %p60, %s59, 3
    %s62 = smul.addr %s61, 8
    %s63 = scalar_lea.vmem %s3, %s62
    %s64 = sadd.s32 0, 0
    %s65 = sld [smem:[#allocation5 + %s64]]
    %p66 = scmp.lt.s32.totalorder %s65, 0
    %s67 = scalar_select %p66, %s65, 0
    %s68 = smul.addr %s67, 16
    %s69 = smul.addr %s68, 4
    %s70 = scalar_lea.vmem %s4, %s69
    %s71 = sadd.s32 0, 0
    %s72 = sld [smem:[#allocation4 + %s71]]
    %p73 = scmp.lt.s32.totalorder %s72, 3
    %s74 = scalar_select %p73, %s72, 3
    %s75 = smul.addr %s74, 8
    %s76 = scalar_lea.vmem %s3, %s75
    %s77 = sadd.s32 0, 0
    %s78 = sld [smem:[#allocation4 + %s77]]
    %s79 = sadd.s32 0, 0
    %s80 = sld [smem:[#allocation5 + %s79]]
    %p81 = scmp.lt.s32.totalorder %s80, 0
    %s82 = scalar_select %p81, %s80, 0
    %s83 = smul.addr %s82, 16
    %s84 = smul.addr %s83, 4
    %s85 = scalar_lea.vmem %s4, %s84
    %s86 = sadd.s32 0, 0
    %s87 = sld [smem:[#allocation5 + %s86]]
    %p89 = scmp.eq.s32.totalorder 0, 0
    // Predicated region
    $region38: #{forward.6} parent=1 // pred_check
      %p90 = pneg %p89
    $region39: #{forward.6} parent=1 // pred_check_branch
      %92 = sbr.rel (%p90) target = $region41
    $region40: #{forward.6} parent=1 // pred_region
      %93 = vst [vmem:[#allocation2] sm:$0xff] 0.0
    $region41: #{forward.6} parent=1 // pred_fallthru
      _
    %s94 = sld [smem:[#allocation6]]
    %p95 = scmp.lt.s32.totalorder 0, %s94
    // Predicated region
    $region42: #{forward.6} parent=1 // pred_check
      %p96 = pneg %p95
    $region43: #{forward.6} parent=1 // pred_check_branch
      %98 = sbr.rel (%p96) target = $region45
    $region44: #{forward.6} parent=1 // pred_region
      %v99 = vld [vmem:[#allocation2] sm:$0xff]
      %v100 = vld [vmem:[%s76] sm:$0xff]
      %v101 = vpack.c.bf16 %v100, %v100
      %v102 = vld [vmem:[%s85] sm:$0xf]
      %v103 = vld [vmem:[%s85 + $0x4] sm:$0xf]
      %v104 = vld [vmem:[%s85 + $0x8] sm:$0xf]
      %v105 = vld [vmem:[%s85 + $0xc] sm:$0xf]
      %v106 = vld [vmem:[%s85 + $0x10] sm:$0xf]
      %v107 = vld [vmem:[%s85 + $0x14] sm:$0xf]
      %v108 = vld [vmem:[%s85 + $0x18] sm:$0xf]
      %v109 = vld [vmem:[%s85 + $0x1c] sm:$0xf]
      %v110 = vld [vmem:[%s85 + $0x20] sm:$0xf]
      %v111 = vld [vmem:[%s85 + $0x24] sm:$0xf]
      %v112 = vld [vmem:[%s85 + $0x28] sm:$0xf]
      %v113 = vld [vmem:[%s85 + $0x2c] sm:$0xf]
      %v114 = vld [vmem:[%s85 + $0x30] sm:$0xf]
      %v115 = vld [vmem:[%s85 + $0x34] sm:$0xf]
      %v116 = vld [vmem:[%s85 + $0x38] sm:$0xf]
      %v117 = vld [vmem:[%s85 + $0x3c] sm:$0xf]
      %v134 = vunpack.c.l.b16 %v102
      %v135 = vunpack.c.l.b16 %v103
      %v136 = vunpack.c.l.b16 %v104
      %v137 = vunpack.c.l.b16 %v105
      %v138 = vunpack.c.l.b16 %v106
      %v139 = vunpack.c.l.b16 %v107
      %v140 = vunpack.c.l.b16 %v108
      %v141 = vunpack.c.l.b16 %v109
      %v142 = vunpack.c.l.b16 %v110
      %v143 = vunpack.c.l.b16 %v111
      %v144 = vunpack.c.l.b16 %v112
      %v145 = vunpack.c.l.b16 %v113
      %v146 = vunpack.c.l.b16 %v114
      %v147 = vunpack.c.l.b16 %v115
      %v148 = vunpack.c.l.b16 %v116
      %v149 = vunpack.c.l.b16 %v117
      %v150 = vpack.c.b16 %v135, %v134
      %v151 = vpack.c.b16 %v137, %v136
      %v152 = vpack.c.b16 %v139, %v138
      %v153 = vpack.c.b16 %v141, %v140
      %v154 = vpack.c.b16 %v143, %v142
      %v155 = vpack.c.b16 %v145, %v144
      %v156 = vpack.c.b16 %v147, %v146
      %v157 = vpack.c.b16 %v149, %v148
      %166 = vmatprep.subr.bf16.mxu0 0
      %167 = vmatpush1.bf16.msra.mxu0 %v150
      %168 = vmatprep.subr.bf16.mxu0 0
      %169 = vmatpush1.bf16.msra.mxu0 %v151
      %170 = vmatprep.subr.bf16.mxu0 0
      %171 = vmatpush1.bf16.msra.mxu0 %v152
      %172 = vmatprep.subr.bf16.mxu0 0
      %173 = vmatpush1.bf16.msra.mxu0 %v153
      %174 = vmatprep.subr.bf16.mxu0 0
      %175 = vmatpush1.bf16.msra.mxu0 %v154
      %176 = vmatprep.subr.bf16.mxu0 0
      %177 = vmatpush1.bf16.msra.mxu0 %v155
      %178 = vmatprep.subr.bf16.mxu0 0
      %179 = vmatpush1.bf16.msra.mxu0 %v156
      %180 = vmatprep.subr.bf16.mxu0 0
      %181 = vmatpush1.bf16.msra.mxu0 %v157
      %182 = vmatprep.subr.bf16.mxu0 0
      %183 = vmatpush1.bf16.msra.mxu0 0
      %184 = vmatprep.subr.bf16.mxu0 0
      %185 = vmatpush1.bf16.msra.mxu0 0
      %186 = vmatprep.subr.bf16.mxu0 0
      %187 = vmatpush1.bf16.msra.mxu0 0
      %188 = vmatprep.subr.bf16.mxu0 0
      %189 = vmatpush1.bf16.msra.mxu0 0
      %190 = vmatprep.subr.bf16.mxu0 0
      %191 = vmatpush1.bf16.msra.mxu0 0
      %192 = vmatprep.subr.bf16.mxu0 0
      %193 = vmatpush1.bf16.msra.mxu0 0
      %194 = vmatprep.subr.bf16.mxu0 0
      %195 = vmatpush1.bf16.msra.mxu0 0
      %196 = vmatprep.subr.bf16.mxu0 0
      %197 = vmatpush1.bf16.msra.mxu0 0
      %198 = vmatprep.mubr.bf16.mxu0 0
      %199 = vmatmul.mubr.bf16.gmra.mrb[0].mxu0 %v101
      %v200 = vpop.f32.mrb[0].mxu0
      %v201 = vadd.f32 0.0, %v200
      %v202 = vpop.f32.mrb[0].mxu0
      %v203 = vpop.f32.mrb[0].mxu0
      %v204 = vpop.f32.mrb[0].mxu0
      %205 = vdwg.mxu0
      %v206 = vadd.f32 %v99, %v201
      %207 = vst [vmem:[#allocation2] sm:$0xff] %v206
    $region45: #{forward.6} parent=1 // pred_fallthru
      _
    // Predicated region
    $region46: #{forward.6} parent=1 // pred_check
      %p208 = pneg %p89
    $region47: #{forward.6} parent=1 // pred_check_branch
      %210 = sbr.rel (%p208) target = $region49
    $region48: #{forward.6} parent=1 // pred_region
      %v211 = vld [vmem:[#allocation2] sm:$0xff]
      %v212 = vld [vmem:[%s5] sm:$0x1]
      %v214 = vlaneseq
      %v215 = vshrl.u32 %v214, 7
      %v216 = vsub.s32 0, %v215
      %v217 = vrot.slane %v212, %v216
      %v219 = vadd.f32 %v211, %v217
      %v220 = vtanh.pop %v219
      %v221 = vlaneseq
      %v222 = vshrl.u32 %v221, 7
      %vm223 = vcmp.lt.s32.totalorder %v222, 6
      %v224 = vsel %vm223, 1, 0
      %v225 = vcvt.s32.f32 %v224
      %v226 = vmul.f32 %v220, %v225
      %v227 = vrot.slane %v226, 4
      %v228 = vadd.f32 %v226, %v227
      %v229 = vrot.slane %v228, 2
      %v230 = vadd.f32 %v228, %v229
      %v231 = vrot.slane %v230, 1
      %v232 = vadd.f32 %v230, %v231
      %v233 = vmul.f32 %v232, 0.16666667
      %v234 = vsub.f32 %v220, %v233
      %v235 = vmul.f32 %v234, %v225
      %v236 = vmul.f32 %v235, %v235
      %v237 = vrot.slane %v236, 4
      %v238 = vadd.f32 %v236, %v237
      %v239 = vrot.slane %v238, 2
      %v240 = vadd.f32 %v238, %v239
      %v241 = vrot.slane %v240, 1
      %v242 = vadd.f32 %v240, %v241
      %v243 = vmul.f32 %v242, 0.16666667
      %v244 = vadd.f32 %v243, 1e-05
      %v245 = vrsqrt.pop %v244
      %v246 = vmul.f32 %v234, %v245
      %v247 = vld [vmem:[%s6] sm:$0x1]
      %v249 = vlaneseq
      %v250 = vshrl.u32 %v249, 7
      %v251 = vsub.s32 0, %v250
      %v252 = vrot.slane %v247, %v251
      %v254 = vmul.f32 %v246, %v252
      %v255 = vld [vmem:[%s7] sm:$0x1]
      %v257 = vlaneseq
      %v258 = vshrl.u32 %v257, 7
      %v259 = vsub.s32 0, %v258
      %v260 = vrot.slane %v255, %v259
      %v262 = vadd.f32 %v254, %v260
      %v263 = vmul.f32 %v262, %v225
      %264 = vst [vmem:[%s12] sm:$0xff] %v263
      %v265 = vpack.c.bf16 %v263, %v263
      %v266 = vld [vmem:[%s8] sm:$0xf]
      %v267 = vld [vmem:[%s8 + $0x4] sm:$0xf]
      %v268 = vld [vmem:[%s8 + $0x8] sm:$0xf]
      %v269 = vld [vmem:[%s8 + $0xc] sm:$0xf]
      %v270 = vld [vmem:[%s8 + $0x10] sm:$0xf]
      %v271 = vld [vmem:[%s8 + $0x14] sm:$0xf]
      %v272 = vld [vmem:[%s8 + $0x18] sm:$0xf]
      %v273 = vld [vmem:[%s8 + $0x1c] sm:$0xf]
      %v274 = vld [vmem:[%s8 + $0x20] sm:$0xf]
      %v275 = vld [vmem:[%s8 + $0x24] sm:$0xf]
      %v276 = vld [vmem:[%s8 + $0x28] sm:$0xf]
      %v277 = vld [vmem:[%s8 + $0x2c] sm:$0xf]
      %v278 = vld [vmem:[%s8 + $0x30] sm:$0xf]
      %v279 = vld [vmem:[%s8 + $0x34] sm:$0xf]
      %v280 = vld [vmem:[%s8 + $0x38] sm:$0xf]
      %v281 = vld [vmem:[%s8 + $0x3c] sm:$0xf]
      %v282 = vld [vmem:[%s9] sm:$0x1]
      %v284 = vlaneseq
      %v285 = vshrl.u32 %v284, 7
      %v286 = vsub.s32 0, %v285
      %v287 = vrot.slane %v282, %v286
      %v305 = vunpack.c.l.b16 %v266
      %v306 = vunpack.c.l.b16 %v267
      %v307 = vunpack.c.l.b16 %v268
      %v308 = vunpack.c.l.b16 %v269
      %v309 = vunpack.c.l.b16 %v270
      %v310 = vunpack.c.l.b16 %v271
      %v311 = vunpack.c.l.b16 %v272
      %v312 = vunpack.c.l.b16 %v273
      %v313 = vunpack.c.l.b16 %v274
      %v314 = vunpack.c.l.b16 %v275
      %v315 = vunpack.c.l.b16 %v276
      %v316 = vunpack.c.l.b16 %v277
      %v317 = vunpack.c.l.b16 %v278
      %v318 = vunpack.c.l.b16 %v279
      %v319 = vunpack.c.l.b16 %v280
      %v320 = vunpack.c.l.b16 %v281
      %v321 = vpack.c.b16 %v306, %v305
      %v322 = vpack.c.b16 %v308, %v307
      %v323 = vpack.c.b16 %v310, %v309
      %v324 = vpack.c.b16 %v312, %v311
      %v325 = vpack.c.b16 %v314, %v313
      %v326 = vpack.c.b16 %v316, %v315
      %v327 = vpack.c.b16 %v318, %v317
      %v328 = vpack.c.b16 %v320, %v319
      %337 = vmatprep.subr.bf16.mxu0 0
      %338 = vmatpush1.bf16.msra.mxu0 %v321
      %339 = vmatprep.subr.bf16.mxu0 0
      %340 = vmatpush1.bf16.msra.mxu0 %v322
      %341 = vmatprep.subr.bf16.mxu0 0
      %342 = vmatpush1.bf16.msra.mxu0 %v323
      %343 = vmatprep.subr.bf16.mxu0 0
      %344 = vmatpush1.bf16.msra.mxu0 %v324
      %345 = vmatprep.subr.bf16.mxu0 0
      %346 = vmatpush1.bf16.msra.mxu0 %v325
      %347 = vmatprep.subr.bf16.mxu0 0
      %348 = vmatpush1.bf16.msra.mxu0 %v326
      %349 = vmatprep.subr.bf16.mxu0 0
      %350 = vmatpush1.bf16.msra.mxu0 %v327
      %351 = vmatprep.subr.bf16.mxu0 0
      %352 = vmatpush1.bf16.msra.mxu0 %v328
      %353 = vmatprep.subr.bf16.mxu0 0
      %354 = vmatpush1.bf16.msra.mxu0 0
      %355 = vmatprep.subr.bf16.mxu0 0
      %356 = vmatpush1.bf16.msra.mxu0 0
      %357 = vmatprep.subr.bf16.mxu0 0
      %358 = vmatpush1.bf16.msra.mxu0 0
      %359 = vmatprep.subr.bf16.mxu0 0
      %360 = vmatpush1.bf16.msra.mxu0 0
      %361 = vmatprep.subr.bf16.mxu0 0
      %362 = vmatpush1.bf16.msra.mxu0 0
      %363 = vmatprep.subr.bf16.mxu0 0
      %364 = vmatpush1.bf16.msra.mxu0 0
      %365 = vmatprep.subr.bf16.mxu0 0
      %366 = vmatpush1.bf16.msra.mxu0 0
      %367 = vmatprep.subr.bf16.mxu0 0
      %368 = vmatpush1.bf16.msra.mxu0 0
      %369 = vmatprep.mubr.bf16.mxu0 0
      %370 = vmatmul.mubr.bf16.gmra.mrb[0].mxu0 %v265
      %v371 = vpop.f32.mrb[0].mxu0
      %v372 = vadd.f32 %v287, %v371
      %v373 = vpop.f32.mrb[0].mxu0
      %v374 = vpop.f32.mrb[0].mxu0
      %v375 = vpop.f32.mrb[0].mxu0
      %376 = vdwg.mxu0
      %v377 = vtanh.pop %v372
      %v378 = vld [vmem:[%s10] sm:$0x1]
      %v380 = vlaneseq
      %v381 = vshrl.u32 %v380, 7
      %v382 = vsub.s32 0, %v381
      %v383 = vrot.slane %v378, %v382
      %v385 = vmul.f32 %v377, %v383
      %v386 = vld [vmem:[%s11] sm:$0x1]
      %v388 = vlaneseq
      %v389 = vshrl.u32 %v388, 7
      %v390 = vsub.s32 0, %v389
      %v391 = vrot.slane %v386, %v390
      %v393 = vadd.f32 %v385, %v391
      %394 = vst [vmem:[#allocation7] sm:$0xff] %v393
    $region49: #{forward.6} parent=1 // pred_fallthru
      _
    // Predicated region
    $region50: #{forward.6} parent=1 // pred_check
      _
    $region51: #{forward.6} parent=1 // pred_check_branch
      %396 = sbr.rel (0) target = $region53
    $region52: #{forward.6} parent=1 // pred_region
      _
    $region53: #{forward.6} parent=1 // pred_fallthru
      _
    // Predicated region
    $region54: #{forward.6} parent=1 // pred_check
      _
    $region55: #{forward.6} parent=1 // pred_check_branch
      %398 = sbr.rel (0) target = $region57
    $region56: #{forward.6} parent=1 // pred_region
      %s400 = ssub.s32 128, 128
      %401 = vsyncadd [#allocation8], %s400
      %s403 = sshll.u32 [#allocation7], 4
      %s404 = int_to_ptr.vmem [resolvable:$true] %s403
      %406 = dma.vmem_to_hbm [thread:$0]  %s404, 128, %s13, [#allocation8]
    $region57: #{forward.6} parent=1 // pred_fallthru
      _
    // Predicated region
    $region58: #{forward.6} parent=1 // pred_check
      _
    $region59: #{forward.6} parent=1 // pred_check_branch
      %408 = sbr.rel (0) target = $region61
    $region60: #{forward.6} parent=1 // pred_region
      _
    $region61: #{forward.6} parent=1 // pred_fallthru
      _
    // Predicated region
    $region62: #{forward.6} parent=1 // pred_check
      _
    $region63: #{forward.6} parent=1 // pred_check_branch
      %410 = sbr.rel (0) target = $region65
    $region64: #{forward.6} parent=1 // pred_region
      %411 = dma.done [#allocation8], 128
    $region65: #{forward.6} parent=1 // pred_fallthru
      _
    %412 = vsyncpa [#allocation8], 1

// kernel: forward.7
$region0: #{forward.7}
  #allocation0 [shape = 'u32[]', space=smem, size = 0x4, offset = 0x4, fixed_abs, tag = 'smem constant byte address 0x4 - core index']
  #allocation1 [shape = 'u32[144,128]{1,0:T(1,128)}', space=vmem, size = 0x12000, scoped, tag = 'internal scratch']
  #allocation2 [shape = 'f32[8,128]{1,0:T(8,128)}', space=vmem, size = 0x1000, scoped, tag = 'scratch operand']
  #allocation3 [shape = 's32[1]{0}', space=sflag, size = 0x4, scoped, tag = 'scoped memory for forward.7']
  #allocation4 [shape = 'u8[512]{0}', space=smem, size = 0x200, scoped, tag = 'prefetched SMEM operand 0']
  #allocation5 [shape = 'u8[512]{0}', space=smem, size = 0x200, scoped, tag = 'prefetched SMEM operand 1']
  #allocation6 [shape = 's32[1]{0:T(128)S(6)}', space=smem, size = 0x200, scoped, tag = 'prefetched SMEM operand 2']
  %s0 = inlined_call_operand.vmem [shape: s32[2], index: 0, kind: input, shape index: {}]
  %s1 = inlined_call_operand.vmem [shape: s32[2], index: 1, kind: input, shape index: {}]
  %s2 = inlined_call_operand.<no memory space> [shape: s32[1], index: 2, kind: input, shape index: {}]
  %s3 = inlined_call_operand.vmem [shape: f32[8,512], index: 3, kind: input, shape index: {}]
  %s4 = inlined_call_operand.vmem [shape: bf16[2,128,128], index: 4, kind: input, shape index: {}]
  %s5 = inlined_call_operand.vmem [shape: f32[1,128], index: 5, kind: input, shape index: {}]
  %s6 = inlined_call_operand.vmem [shape: f32[1,128], index: 6, kind: input, shape index: {}]
  %s7 = inlined_call_operand.vmem [shape: f32[1,128], index: 7, kind: input, shape index: {}]
  %s8 = inlined_call_operand.vmem [shape: bf16[128,128], index: 8, kind: input, shape index: {}]
  %s9 = inlined_call_operand.vmem [shape: f32[1,128], index: 9, kind: input, shape index: {}]
  %s10 = inlined_call_operand.vmem [shape: f32[1,128], index: 10, kind: input, shape index: {}]
  %s11 = inlined_call_operand.vmem [shape: f32[1,128], index: 11, kind: input, shape index: {}]
  %s12 = inlined_call_operand.vmem [shape: f32[8,128], index: 12, kind: output, shape index: {0}]
  %s13 = inlined_call_operand.hbm [shape: f32[8,128], index: 13, kind: output, shape index: {1}]
  %14 = xla_tuple %s12, %s13
  %s15 = sld [smem:[#allocation0]]
  $region89: #{forward.7} parent=0
    _
  %s17 = ssub.s32 1, %s15
  %s18 = scalar_select 0, %s17, %s15
  %s19 = sshll.u32 %s0, 4
  %s20 = int_to_ptr.vmem [resolvable:$true] %s19
  %22 = dma.vmem_to_smem %s20, 16, [#allocation4], [#allocation3]
  %s23 = sshll.u32 %s1, 4
  %s24 = int_to_ptr.vmem [resolvable:$true] %s23
  %26 = dma.vmem_to_smem %s24, 16, [#allocation5], [#allocation3]
  %27 = sst [smem:[#allocation6]] %s2
  %28 = dma.done [#allocation3], 32
  %29 = sfence
  $region1: #{forward.7} parent=0
    #allocation7 [shape = 'u8[4096]{0}', space=vmem, size = 0x1000, scoped, tag = 'output window, operand 1, single buffered']
    #allocation8 [shape = 's32[2]{0}', space=sflag, size = 0x8, scoped, tag = 'scoped memory for forward.7']
    %30 = vsyncpa [#allocation8], 0
    loop: start=0, step=1, limit=4
    $region2: #{forward.7} parent=1 // loop_pre_header
      _
    $region3: #{forward.7} parent=1 // loop_header
      %s32 = sphi 0, %s36
      %p33 = scmp.ge.s32.totalorder %s32, 4
      %s39 = sphi 0, %s51
      %s40 = sphi 0, %s47
      %s41 = sphi 0, %s39
      %s42 = sphi 0, %s40
      %s43 = sphi 0, %s41
      %s44 = sphi 0, %s42
      %s60 = sphi 0, %s62
      %s63 = sphi 0, %s60
      %s64 = sphi 0, %s63
      %s80 = sphi 0, %s64
      %s92 = sphi 0, %s94
      %s95 = sphi 0, %s92
      %s96 = sphi 0, %s95
      %s112 = sphi 0, %s96
      %s118 = sphi 0, %s120
      %s121 = sphi 0, %s118
      %s122 = sphi 0, %s121
      %s138 = sphi 0, %s122
      %s144 = sphi 0, %s146
      %s147 = sphi 0, %s144
      %s148 = sphi 0, %s147
      %s164 = sphi 0, %s148
      %s170 = sphi 0, %s172
      %s173 = sphi 0, %s170
      %s174 = sphi 0, %s173
      %s190 = sphi 0, %s174
      %s196 = sphi 0, %s198
      %s199 = sphi 0, %s196
      %s200 = sphi 0, %s199
      %s216 = sphi 0, %s200
      %s222 = sphi 0, %s224
      %s225 = sphi 0, %s222
      %s226 = sphi 0, %s225
      %s242 = sphi 0, %s226
      %s248 = sphi 0, %s250
      %s251 = sphi 0, %s248
      %s252 = sphi 0, %s251
      %s268 = sphi 0, %s252
      %s274 = sphi 0, %s276
      %s277 = sphi 0, %s274
      %s278 = sphi 0, %s277
      %s294 = sphi 0, %s278
      %s300 = sphi 0, %s302
      %s303 = sphi 0, %s300
      %s304 = sphi 0, %s303
      %s320 = sphi 0, %s304
      %s326 = sphi 0, %s328
      %s329 = sphi 0, %s326
      %s330 = sphi 0, %s329
      %s346 = sphi 0, %s330
    $region4: #{forward.7} parent=1 // loop_header_branch
      %35 = sbr.rel (%p33) target = $region8
    $region5: #{forward.7} parent=1 // loop_body
      %s37 = ssub.s32 %s32, 1
      %s38 = ssub.s32 %s32, 2
      %s45 = sadd.s32 1, %s40
      %p46 = scmp.ge.s32.totalorder %s45, 2
      %s47 = scalar_select %p46, 0, %s45
      %s48 = sadd.s32 1, %s39
      %s49 = scalar_select %p46, %s48, %s39
      %p50 = scmp.ge.s32.totalorder %s49, 1
      %s51 = scalar_select %p50, 0, %s49
      %s52 = smul.u32 %s39, 2
      %s53 = sadd.s32 %s52, %s40
      %s54 = sld [smem:[#allocation4 + %s53]]
      %s55 = smul.u32 %s51, 2
      %s56 = sadd.s32 %s55, %s47
      %s57 = sld [smem:[#allocation4 + %s56]]
      %s58 = ssub.s32 %s54, %s57
      %p59 = scmp.eq.s32.totalorder %s58, 0
      %s61 = sadd.s32 %s60, 1
      %s62 = scalar_select %p59, %s60, %s61
      %p65 = pneg %p59
      %p66 = scmp.eq.s32.totalorder %s32, 1
      %p67 = por %p65, %p66
      %p68 = scmp.ne.s32.totalorder %s60, %s63
      %p69 = scmp.eq.s32.totalorder %s32, 0
      %p70 = por %p68, %p69
      %p71 = scmp.ne.s32.totalorder %s60, %s63
      %p72 = scmp.eq.s32.totalorder %s37, 1
      %p73 = por %p71, %p72
      %p74 = scmp.ne.s32.totalorder %s63, %s64
      %p75 = scmp.eq.s32.totalorder %s37, 0
      %p76 = por %p74, %p75
      %p77 = scmp.ne.s32.totalorder %s63, %s64
      %p78 = scmp.eq.s32.totalorder %s38, 1
      %p79 = por %p77, %p78
      %p81 = scmp.ne.s32.totalorder %s64, %s80
      %p82 = scmp.eq.s32.totalorder %s38, 0
      %p83 = por %p81, %p82
      %s84 = smul.u32 %s39, 2
      %s85 = sadd.s32 %s84, %s40
      %s86 = sld [smem:[#allocation5 + %s85]]
      %s87 = smul.u32 %s51, 2
      %s88 = sadd.s32 %s87, %s47
      %s89 = sld [smem:[#allocation5 + %s88]]
      %s90 = ssub.s32 %s86, %s89
      %p91 = scmp.eq.s32.totalorder %s90, 0
      %s93 = sadd.s32 %s92, 1
      %s94 = scalar_select %p91, %s92, %s93
      %p97 = pneg %p91
      %p98 = scmp.eq.s32.totalorder %s32, 1
      %p99 = por %p97, %p98
      %p100 = scmp.ne.s32.totalorder %s92, %s95
      %p101 = scmp.eq.s32.totalorder %s32, 0
      %p102 = por %p100, %p101
      %p103 = scmp.ne.s32.totalorder %s92, %s95
      %p104 = scmp.eq.s32.totalorder %s37, 1
      %p105 = por %p103, %p104
      %p106 = scmp.ne.s32.totalorder %s95, %s96
      %p107 = scmp.eq.s32.totalorder %s37, 0
      %p108 = por %p106, %p107
      %p109 = scmp.ne.s32.totalorder %s95, %s96
      %p110 = scmp.eq.s32.totalorder %s38, 1
      %p111 = por %p109, %p110
      %p113 = scmp.ne.s32.totalorder %s96, %s112
      %p114 = scmp.eq.s32.totalorder %s38, 0
      %p115 = por %p113, %p114
      %s116 = ssub.s32 %s39, %s51
      %p117 = scmp.eq.s32.totalorder %s116, 0
      %s119 = sadd.s32 %s118, 1
      %s120 = scalar_select %p117, %s118, %s119
      %p123 = pneg %p117
      %p124 = scmp.eq.s32.totalorder %s32, 1
      %p125 = por %p123, %p124
      %p126 = scmp.ne.s32.totalorder %s118, %s121
      %p127 = scmp.eq.s32.totalorder %s32, 0
      %p128 = por %p126, %p127
      %p129 = scmp.ne.s32.totalorder %s118, %s121
      %p130 = scmp.eq.s32.totalorder %s37, 1
      %p131 = por %p129, %p130
      %p132 = scmp.ne.s32.totalorder %s121, %s122
      %p133 = scmp.eq.s32.totalorder %s37, 0
      %p134 = por %p132, %p133
      %p135 = scmp.ne.s32.totalorder %s121, %s122
      %p136 = scmp.eq.s32.totalorder %s38, 1
      %p137 = por %p135, %p136
      %p139 = scmp.ne.s32.totalorder %s122, %s138
      %p140 = scmp.eq.s32.totalorder %s38, 0
      %p141 = por %p139, %p140
      %s142 = ssub.s32 %s39, %s51
      %p143 = scmp.eq.s32.totalorder %s142, 0
      %s145 = sadd.s32 %s144, 1
      %s146 = scalar_select %p143, %s144, %s145
      %p149 = pneg %p143
      %p150 = scmp.eq.s32.totalorder %s32, 1
      %p151 = por %p149, %p150
      %p152 = scmp.ne.s32.totalorder %s144, %s147
      %p153 = scmp.eq.s32.totalorder %s32, 0
      %p154 = por %p152, %p153
      %p155 = scmp.ne.s32.totalorder %s144, %s147
      %p156 = scmp.eq.s32.totalorder %s37, 1
      %p157 = por %p155, %p156
      %p158 = scmp.ne.s32.totalorder %s147, %s148
      %p159 = scmp.eq.s32.totalorder %s37, 0
      %p160 = por %p158, %p159
      %p161 = scmp.ne.s32.totalorder %s147, %s148
      %p162 = scmp.eq.s32.totalorder %s38, 1
      %p163 = por %p161, %p162
      %p165 = scmp.ne.s32.totalorder %s148, %s164
      %p166 = scmp.eq.s32.totalorder %s38, 0
      %p167 = por %p165, %p166
      %s168 = ssub.s32 %s39, %s51
      %p169 = scmp.eq.s32.totalorder %s168, 0
      %s171 = sadd.s32 %s170, 1
      %s172 = scalar_select %p169, %s170, %s171
      %p175 = pneg %p169
      %p176 = scmp.eq.s32.totalorder %s32, 1
      %p177 = por %p175, %p176
      %p178 = scmp.ne.s32.totalorder %s170, %s173
      %p179 = scmp.eq.s32.totalorder %s32, 0
      %p180 = por %p178, %p179
      %p181 = scmp.ne.s32.totalorder %s170, %s173
      %p182 = scmp.eq.s32.totalorder %s37, 1
      %p183 = por %p181, %p182
      %p184 = scmp.ne.s32.totalorder %s173, %s174
      %p185 = scmp.eq.s32.totalorder %s37, 0
      %p186 = por %p184, %p185
      %p187 = scmp.ne.s32.totalorder %s173, %s174
      %p188 = scmp.eq.s32.totalorder %s38, 1
      %p189 = por %p187, %p188
      %p191 = scmp.ne.s32.totalorder %s174, %s190
      %p192 = scmp.eq.s32.totalorder %s38, 0
      %p193 = por %p191, %p192
      %s194 = ssub.s32 %s39, %s51
      %p195 = scmp.eq.s32.totalorder %s194, 0
      %s197 = sadd.s32 %s196, 1
      %s198 = scalar_select %p195, %s196, %s197
      %p201 = pneg %p195
      %p202 = scmp.eq.s32.totalorder %s32, 1
      %p203 = por %p201, %p202
      %p204 = scmp.ne.s32.totalorder %s196, %s199
      %p205 = scmp.eq.s32.totalorder %s32, 0
      %p206 = por %p204, %p205
      %p207 = scmp.ne.s32.totalorder %s196, %s199
      %p208 = scmp.eq.s32.totalorder %s37, 1
      %p209 = por %p207, %p208
      %p210 = scmp.ne.s32.totalorder %s199, %s200
      %p211 = scmp.eq.s32.totalorder %s37, 0
      %p212 = por %p210, %p211
      %p213 = scmp.ne.s32.totalorder %s199, %s200
      %p214 = scmp.eq.s32.totalorder %s38, 1
      %p215 = por %p213, %p214
      %p217 = scmp.ne.s32.totalorder %s200, %s216
      %p218 = scmp.eq.s32.totalorder %s38, 0
      %p219 = por %p217, %p218
      %s220 = ssub.s32 %s39, %s51
      %p221 = scmp.eq.s32.totalorder %s220, 0
      %s223 = sadd.s32 %s222, 1
      %s224 = scalar_select %p221, %s222, %s223
      %p227 = pneg %p221
      %p228 = scmp.eq.s32.totalorder %s32, 1
      %p229 = por %p227, %p228
      %p230 = scmp.ne.s32.totalorder %s222, %s225
      %p231 = scmp.eq.s32.totalorder %s32, 0
      %p232 = por %p230, %p231
      %p233 = scmp.ne.s32.totalorder %s222, %s225
      %p234 = scmp.eq.s32.totalorder %s37, 1
      %p235 = por %p233, %p234
      %p236 = scmp.ne.s32.totalorder %s225, %s226
      %p237 = scmp.eq.s32.totalorder %s37, 0
      %p238 = por %p236, %p237
      %p239 = scmp.ne.s32.totalorder %s225, %s226
      %p240 = scmp.eq.s32.totalorder %s38, 1
      %p241 = por %p239, %p240
      %p243 = scmp.ne.s32.totalorder %s226, %s242
      %p244 = scmp.eq.s32.totalorder %s38, 0
      %p245 = por %p243, %p244
      %s246 = ssub.s32 %s39, %s51
      %p247 = scmp.eq.s32.totalorder %s246, 0
      %s249 = sadd.s32 %s248, 1
      %s250 = scalar_select %p247, %s248, %s249
      %p253 = pneg %p247
      %p254 = scmp.eq.s32.totalorder %s32, 1
      %p255 = por %p253, %p254
      %p256 = scmp.ne.s32.totalorder %s248, %s251
      %p257 = scmp.eq.s32.totalorder %s32, 0
      %p258 = por %p256, %p257
      %p259 = scmp.ne.s32.totalorder %s248, %s251
      %p260 = scmp.eq.s32.totalorder %s37, 1
      %p261 = por %p259, %p260
      %p262 = scmp.ne.s32.totalorder %s251, %s252
      %p263 = scmp.eq.s32.totalorder %s37, 0
      %p264 = por %p262, %p263
      %p265 = scmp.ne.s32.totalorder %s251, %s252
      %p266 = scmp.eq.s32.totalorder %s38, 1
      %p267 = por %p265, %p266
      %p269 = scmp.ne.s32.totalorder %s252, %s268
      %p270 = scmp.eq.s32.totalorder %s38, 0
      %p271 = por %p269, %p270
      %s272 = ssub.s32 %s39, %s51
      %p273 = scmp.eq.s32.totalorder %s272, 0
      %s275 = sadd.s32 %s274, 1
      %s276 = scalar_select %p273, %s274, %s275
      %p279 = pneg %p273
      %p280 = scmp.eq.s32.totalorder %s32, 1
      %p281 = por %p279, %p280
      %p282 = scmp.ne.s32.totalorder %s274, %s277
      %p283 = scmp.eq.s32.totalorder %s32, 0
      %p284 = por %p282, %p283
      %p285 = scmp.ne.s32.totalorder %s274, %s277
      %p286 = scmp.eq.s32.totalorder %s37, 1
      %p287 = por %p285, %p286
      %p288 = scmp.ne.s32.totalorder %s277, %s278
      %p289 = scmp.eq.s32.totalorder %s37, 0
      %p290 = por %p288, %p289
      %p291 = scmp.ne.s32.totalorder %s277, %s278
      %p292 = scmp.eq.s32.totalorder %s38, 1
      %p293 = por %p291, %p292
      %p295 = scmp.ne.s32.totalorder %s278, %s294
      %p296 = scmp.eq.s32.totalorder %s38, 0
      %p297 = por %p295, %p296
      %s298 = ssub.s32 %s39, %s51
      %p299 = scmp.eq.s32.totalorder %s298, 0
      %s301 = sadd.s32 %s300, 1
      %s302 = scalar_select %p299, %s300, %s301
      %p305 = pneg %p299
      %p306 = scmp.eq.s32.totalorder %s32, 1
      %p307 = por %p305, %p306
      %p308 = scmp.ne.s32.totalorder %s300, %s303
      %p309 = scmp.eq.s32.totalorder %s32, 0
      %p310 = por %p308, %p309
      %p311 = scmp.ne.s32.totalorder %s300, %s303
      %p312 = scmp.eq.s32.totalorder %s37, 1
      %p313 = por %p311, %p312
      %p314 = scmp.ne.s32.totalorder %s303, %s304
      %p315 = scmp.eq.s32.totalorder %s37, 0
      %p316 = por %p314, %p315
      %p317 = scmp.ne.s32.totalorder %s303, %s304
      %p318 = scmp.eq.s32.totalorder %s38, 1
      %p319 = por %p317, %p318
      %p321 = scmp.ne.s32.totalorder %s304, %s320
      %p322 = scmp.eq.s32.totalorder %s38, 0
      %p323 = por %p321, %p322
      %s324 = ssub.s32 %s39, %s51
      %p325 = scmp.eq.s32.totalorder %s324, 0
      %s327 = sadd.s32 %s326, 1
      %s328 = scalar_select %p325, %s326, %s327
      %p331 = pneg %p325
      %p332 = scmp.eq.s32.totalorder %s32, 1
      %p333 = por %p331, %p332
      %p334 = scmp.ne.s32.totalorder %s326, %s329
      %p335 = scmp.eq.s32.totalorder %s32, 0
      %p336 = por %p334, %p335
      %p337 = scmp.ne.s32.totalorder %s326, %s329
      %p338 = scmp.eq.s32.totalorder %s37, 1
      %p339 = por %p337, %p338
      %p340 = scmp.ne.s32.totalorder %s329, %s330
      %p341 = scmp.eq.s32.totalorder %s37, 0
      %p342 = por %p340, %p341
      %p343 = scmp.ne.s32.totalorder %s329, %s330
      %p344 = scmp.eq.s32.totalorder %s38, 1
      %p345 = por %p343, %p344
      %p347 = scmp.ne.s32.totalorder %s330, %s346
      %p348 = scmp.eq.s32.totalorder %s38, 0
      %p349 = por %p347, %p348
      %p350 = scmp.le.s32.totalorder 1, %s32
      %p351 = scmp.lt.s32.totalorder %s32, 3
      %p352 = pnand %p350, %p351
      %p353 = pneg %p352
      // Predicated region
      $region9: #{forward.7} parent=5 // pred_check
        _
      $region10: #{forward.7} parent=5 // pred_check_branch
        %355 = sbr.rel (%p352) target = $region12
      $region11: #{forward.7} parent=5 // pred_region
        %s356 = ssub.s32 %s32, 1
        // Predicated region
        $region13: #{forward.7} parent=11 // pred_check
          %p357 = pneg %p134
        $region14: #{forward.7} parent=11 // pred_check_branch
          %359 = sbr.rel (%p357) target = $region16
        $region15: #{forward.7} parent=11 // pred_region
          %p360 = scmp.lt.s32.totalorder %s41, 0
          %s361 = scalar_select %p360, %s41, 0
          %s362 = scalar_lea.vmem %s5, %s361
        $region16: #{forward.7} parent=11 // pred_fallthru
          _
        // Predicated region
        $region17: #{forward.7} parent=11 // pred_check
          %p363 = pneg %p160
        $region18: #{forward.7} parent=11 // pred_check_branch
          %365 = sbr.rel (%p363) target = $region20
        $region19: #{forward.7} parent=11 // pred_region
          %p366 = scmp.lt.s32.totalorder %s41, 0
          %s367 = scalar_select %p366, %s41, 0
          %s368 = scalar_lea.vmem %s6, %s367
        $region20: #{forward.7} parent=11 // pred_fallthru
          _
        // Predicated region
        $region21: #{forward.7} parent=11 // pred_check
          %p369 = pneg %p186
        $region22: #{forward.7} parent=11 // pred_check_branch
          %371 = sbr.rel (%p369) target = $region24
        $region23: #{forward.7} parent=11 // pred_region
          %p372 = scmp.lt.s32.totalorder %s41, 0
          %s373 = scalar_select %p372, %s41, 0
          %s374 = scalar_lea.vmem %s7, %s373
        $region24: #{forward.7} parent=11 // pred_fallthru
          _
        // Predicated region
        $region25: #{forward.7} parent=11 // pred_check
          %p375 = pneg %p212
        $region26: #{forward.7} parent=11 // pred_check_branch
          %377 = sbr.rel (%p375) target = $region28
        $region27: #{forward.7} parent=11 // pred_region
          %s378 = smul.u32 16, %s41
          %p379 = scmp.lt.s32.totalorder %s378, 15
          %s380 = scalar_select %p379, %s378, 15
          %s381 = smul.addr %s380, 4
          %s382 = scalar_lea.vmem %s8, %s381
          %s383 = smul.u32 16, %s41
        $region28: #{forward.7} parent=11 // pred_fallthru
          _
        // Predicated region
        $region29: #{forward.7} parent=11 // pred_check
          %p384 = pneg %p238
        $region30: #{forward.7} parent=11 // pred_check_branch
          %386 = sbr.rel (%p384) target = $region32
        $region31: #{forward.7} parent=11 // pred_region
          %p387 = scmp.lt.s32.totalorder %s41, 0
          %s388 = scalar_select %p387, %s41, 0
          %s389 = scalar_lea.vmem %s9, %s388
        $region32: #{forward.7} parent=11 // pred_fallthru
          _
        // Predicated region
        $region33: #{forward.7} parent=11 // pred_check
          %p390 = pneg %p264
        $region34: #{forward.7} parent=11 // pred_check_branch
          %392 = sbr.rel (%p390) target = $region36
        $region35: #{forward.7} parent=11 // pred_region
          %p393 = scmp.lt.s32.totalorder %s41, 0
          %s394 = scalar_select %p393, %s41, 0
          %s395 = scalar_lea.vmem %s10, %s394
        $region36: #{forward.7} parent=11 // pred_fallthru
          _
        // Predicated region
        $region37: #{forward.7} parent=11 // pred_check
          %p396 = pneg %p290
        $region38: #{forward.7} parent=11 // pred_check_branch
          %398 = sbr.rel (%p396) target = $region40
        $region39: #{forward.7} parent=11 // pred_region
          %p399 = scmp.lt.s32.totalorder %s41, 0
          %s400 = scalar_select %p399, %s41, 0
          %s401 = scalar_lea.vmem %s11, %s400
        $region40: #{forward.7} parent=11 // pred_fallthru
          _
      $region12: #{forward.7} parent=5 // pred_fallthru
        _
      %p402 = scmp.lt.s32.totalorder %s32, 2
      // Predicated region
      $region41: #{forward.7} parent=5 // pred_check
        %p403 = pneg %p402
      $region42: #{forward.7} parent=5 // pred_check_branch
        %405 = sbr.rel (%p403) target = $region44
      $region43: #{forward.7} parent=5 // pred_region
        // Predicated region
        $region45: #{forward.7} parent=43 // pred_check
          %p406 = pneg %p70
        $region46: #{forward.7} parent=43 // pred_check_branch
          %408 = sbr.rel (%p406) target = $region48
        $region47: #{forward.7} parent=43 // pred_region
          %s409 = smul.u32 %s39, 2
          %s410 = sadd.s32 %s409, %s40
          %s411 = sld [smem:[#allocation4 + %s410]]
          %p412 = scmp.lt.s32.totalorder %s411, 3
          %s413 = scalar_select %p412, %s411, 3
          %s414 = smul.addr %s413, 8
          %s415 = scalar_lea.vmem %s3, %s414
          %s416 = smul.u32 %s39, 2
          %s417 = sadd.s32 %s416, %s40
          %s418 = sld [smem:[#allocation4 + %s417]]
        $region48: #{forward.7} parent=43 // pred_fallthru
          _
        // Predicated region
        $region49: #{forward.7} parent=43 // pred_check
          %p419 = pneg %p102
        $region50: #{forward.7} parent=43 // pred_check_branch
          %421 = sbr.rel (%p419) target = $region52
        $region51: #{forward.7} parent=43 // pred_region
          %s422 = smul.u32 %s39, 2
          %s423 = sadd.s32 %s422, %s40
          %s424 = sld [smem:[#allocation5 + %s423]]
          %p425 = scmp.lt.s32.totalorder %s424, 1
          %s426 = scalar_select %p425, %s424, 1
          %s427 = smul.addr %s426, 16
          %s428 = smul.addr %s427, 4
          %s429 = scalar_lea.vmem %s4, %s428
          %s430 = smul.u32 %s39, 2
          %s431 = sadd.s32 %s430, %s40
          %s432 = sld [smem:[#allocation5 + %s431]]
        $region52: #{forward.7} parent=43 // pred_fallthru
          _
      $region44: #{forward.7} parent=5 // pred_fallthru
        _
      %p433 = scmp.le.s32.totalorder 1, %s32
      %p434 = scmp.lt.s32.totalorder %s32, 3
      %p435 = pnand %p433, %p434
      %p436 = pneg %p435
      // Predicated region
      $region53: #{forward.7} parent=5 // pred_check
        _
      $region54: #{forward.7} parent=5 // pred_check_branch
        %438 = sbr.rel (%p435) target = $region56
      $region55: #{forward.7} parent=5 // pred_region
        %s439 = ssub.s32 %s32, 1
        %s440 = smul.u32 %s41, 2
        %s441 = sadd.s32 %s440, %s42
        %s442 = sld [smem:[#allocation4 + %s441]]
        %p443 = scmp.lt.s32.totalorder %s442, 3
        %s444 = scalar_select %p443, %s442, 3
        %s445 = smul.addr %s444, 8
        %s446 = scalar_lea.vmem %s3, %s445
        %p447 = pneg %p76
        %p448 = pneg %p73
        %s449 = smul.u32 %s41, 2
        %s450 = sadd.s32 %s449, %s42
        %s451 = sld [smem:[#allocation5 + %s450]]
        %p452 = scmp.lt.s32.totalorder %s451, 1
        %s453 = scalar_select %p452, %s451, 1
        %s454 = smul.addr %s453, 16
        %s455 = smul.addr %s454, 4
        %s456 = scalar_lea.vmem %s4, %s455
        %p457 = pneg %p108
        %p458 = pneg %p105
        %p459 = scmp.lt.s32.totalorder %s41, 0
        %s460 = scalar_select %p459, %s41, 0
        %s461 = scalar_lea.vmem %s5, %s460
        %p462 = pneg %p134
        %p463 = pneg %p131
        %p464 = scmp.lt.s32.totalorder %s41, 0
        %s465 = scalar_select %p464, %s41, 0
        %s466 = scalar_lea.vmem %s6, %s465
        %p467 = pneg %p160
        %p468 = pneg %p157
        %p469 = scmp.lt.s32.totalorder %s41, 0
        %s470 = scalar_select %p469, %s41, 0
        %s471 = scalar_lea.vmem %s7, %s470
        %p472 = pneg %p186
        %p473 = pneg %p183
        %s474 = smul.u32 16, %s41
        %p475 = scmp.lt.s32.totalorder %s474, 15
        %s476 = scalar_select %p475, %s474, 15
        %s477 = smul.addr %s476, 4
        %s478 = scalar_lea.vmem %s8, %s477
        %p479 = pneg %p212
        %p480 = pneg %p209
        %p481 = scmp.lt.s32.totalorder %s41, 0
        %s482 = scalar_select %p481, %s41, 0
        %s483 = scalar_lea.vmem %s9, %s482
        %p484 = pneg %p238
        %p485 = pneg %p235
        %p486 = scmp.lt.s32.totalorder %s41, 0
        %s487 = scalar_select %p486, %s41, 0
        %s488 = scalar_lea.vmem %s10, %s487
        %p489 = pneg %p264
        %p490 = pneg %p261
        %p491 = scmp.lt.s32.totalorder %s41, 0
        %s492 = scalar_select %p491, %s41, 0
        %s493 = scalar_lea.vmem %s11, %s492
        %p494 = pneg %p290
        %p495 = pneg %p287
        %p496 = pneg %p316
        %p497 = pneg %p313
        %p498 = scmp.lt.s32.totalorder %s41, 0
        %s499 = scalar_select %p498, %s41, 0
        %s500 = smul.addr %s499, 8
        %s501 = scalar_lea.vmem %s12, %s500
        %p502 = pneg %p342
        %p503 = pneg %p339
        %s504 = smul.u32 %s41, 2
        %s505 = sadd.s32 %s504, %s42
        %s506 = sld [smem:[#allocation4 + %s505]]
        %p507 = scmp.lt.s32.totalorder %s506, 3
        %s508 = scalar_select %p507, %s506, 3
        %s509 = smul.addr %s508, 8
        %s510 = scalar_lea.vmem %s3, %s509
        %s511 = smul.u32 %s41, 2
        %s512 = sadd.s32 %s511, %s42
        %s513 = sld [smem:[#allocation4 + %s512]]
        %s514 = smul.u32 %s41, 2
        %s515 = sadd.s32 %s514, %s42
        %s516 = sld [smem:[#allocation5 + %s515]]
        %p517 = scmp.lt.s32.totalorder %s516, 1
        %s518 = scalar_select %p517, %s516, 1
        %s519 = smul.addr %s518, 16
        %s520 = smul.addr %s519, 4
        %s521 = scalar_lea.vmem %s4, %s520
        %s522 = smul.u32 %s41, 2
        %s523 = sadd.s32 %s522, %s42
        %s524 = sld [smem:[#allocation5 + %s523]]
        %p525 = scmp.lt.s32.totalorder %s41, 0
        %s526 = scalar_select %p525, %s41, 0
        %s527 = scalar_lea.vmem %s5, %s526
        %p528 = scmp.lt.s32.totalorder %s41, 0
        %s529 = scalar_select %p528, %s41, 0
        %s530 = scalar_lea.vmem %s6, %s529
        %p531 = scmp.lt.s32.totalorder %s41, 0
        %s532 = scalar_select %p531, %s41, 0
        %s533 = scalar_lea.vmem %s7, %s532
        %s534 = smul.u32 16, %s41
        %p535 = scmp.lt.s32.totalorder %s534, 15
        %s536 = scalar_select %p535, %s534, 15
        %s537 = smul.addr %s536, 4
        %s538 = scalar_lea.vmem %s8, %s537
        %s539 = smul.u32 16, %s41
        %p540 = scmp.lt.s32.totalorder %s41, 0
        %s541 = scalar_select %p540, %s41, 0
        %s542 = scalar_lea.vmem %s9, %s541
        %p543 = scmp.lt.s32.totalorder %s41, 0
        %s544 = scalar_select %p543, %s41, 0
        %s545 = scalar_lea.vmem %s10, %s544
        %p546 = scmp.lt.s32.totalorder %s41, 0
        %s547 = scalar_select %p546, %s41, 0
        %s548 = scalar_lea.vmem %s11, %s547
        %p549 = scmp.lt.s32.totalorder %s41, 0
        %s550 = scalar_select %p549, %s41, 0
        %s551 = smul.addr %s550, 8
        %s552 = scalar_lea.vmem %s12, %s551
        %p554 = scmp.eq.s32.totalorder %s42, 0
        // Predicated region
        $region57: #{forward.7} parent=55 // pred_check
          %p555 = pneg %p554
        $region58: #{forward.7} parent=55 // pred_check_branch
          %557 = sbr.rel (%p555) target = $region60
        $region59: #{forward.7} parent=55 // pred_region
          %558 = vst [vmem:[#allocation2] sm:$0xff] 0.0
        $region60: #{forward.7} parent=55 // pred_fallthru
          _
        %s559 = sld [smem:[#allocation6 + %s41]]
        %p560 = scmp.lt.s32.totalorder %s42, %s559
        // Predicated region
        $region61: #{forward.7} parent=55 // pred_check
          %p561 = pneg %p560
        $region62: #{forward.7} parent=55 // pred_check_branch
          %563 = sbr.rel (%p561) target = $region64
        $region63: #{forward.7} parent=55 // pred_region
          %v564 = vld [vmem:[#allocation2] sm:$0xff]
          %v565 = vld [vmem:[%s510] sm:$0xff]
          %v566 = vpack.c.bf16 %v565, %v565
          %v567 = vld [vmem:[%s521] sm:$0xf]
          %v568 = vld [vmem:[%s521 + $0x4] sm:$0xf]
          %v569 = vld [vmem:[%s521 + $0x8] sm:$0xf]
          %v570 = vld [vmem:[%s521 + $0xc] sm:$0xf]
          %v571 = vld [vmem:[%s521 + $0x10] sm:$0xf]
          %v572 = vld [vmem:[%s521 + $0x14] sm:$0xf]
          %v573 = vld [vmem:[%s521 + $0x18] sm:$0xf]
          %v574 = vld [vmem:[%s521 + $0x1c] sm:$0xf]
          %v575 = vld [vmem:[%s521 + $0x20] sm:$0xf]
          %v576 = vld [vmem:[%s521 + $0x24] sm:$0xf]
          %v577 = vld [vmem:[%s521 + $0x28] sm:$0xf]
          %v578 = vld [vmem:[%s521 + $0x2c] sm:$0xf]
          %v579 = vld [vmem:[%s521 + $0x30] sm:$0xf]
          %v580 = vld [vmem:[%s521 + $0x34] sm:$0xf]
          %v581 = vld [vmem:[%s521 + $0x38] sm:$0xf]
          %v582 = vld [vmem:[%s521 + $0x3c] sm:$0xf]
          %v599 = vunpack.c.l.b16 %v567
          %v600 = vunpack.c.l.b16 %v568
          %v601 = vunpack.c.l.b16 %v569
          %v602 = vunpack.c.l.b16 %v570
          %v603 = vunpack.c.l.b16 %v571
          %v604 = vunpack.c.l.b16 %v572
          %v605 = vunpack.c.l.b16 %v573
          %v606 = vunpack.c.l.b16 %v574
          %v607 = vunpack.c.l.b16 %v575
          %v608 = vunpack.c.l.b16 %v576
          %v609 = vunpack.c.l.b16 %v577
          %v610 = vunpack.c.l.b16 %v578
          %v611 = vunpack.c.l.b16 %v579
          %v612 = vunpack.c.l.b16 %v580
          %v613 = vunpack.c.l.b16 %v581
          %v614 = vunpack.c.l.b16 %v582
          %v615 = vpack.c.b16 %v600, %v599
          %v616 = vpack.c.b16 %v602, %v601
          %v617 = vpack.c.b16 %v604, %v603
          %v618 = vpack.c.b16 %v606, %v605
          %v619 = vpack.c.b16 %v608, %v607
          %v620 = vpack.c.b16 %v610, %v609
          %v621 = vpack.c.b16 %v612, %v611
          %v622 = vpack.c.b16 %v614, %v613
          %631 = vmatprep.subr.bf16.mxu0 0
          %632 = vmatpush1.bf16.msra.mxu0 %v615
          %633 = vmatprep.subr.bf16.mxu0 0
          %634 = vmatpush1.bf16.msra.mxu0 %v616
          %635 = vmatprep.subr.bf16.mxu0 0
          %636 = vmatpush1.bf16.msra.mxu0 %v617
          %637 = vmatprep.subr.bf16.mxu0 0
          %638 = vmatpush1.bf16.msra.mxu0 %v618
          %639 = vmatprep.subr.bf16.mxu0 0
          %640 = vmatpush1.bf16.msra.mxu0 %v619
          %641 = vmatprep.subr.bf16.mxu0 0
          %642 = vmatpush1.bf16.msra.mxu0 %v620
          %643 = vmatprep.subr.bf16.mxu0 0
          %644 = vmatpush1.bf16.msra.mxu0 %v621
          %645 = vmatprep.subr.bf16.mxu0 0
          %646 = vmatpush1.bf16.msra.mxu0 %v622
          %647 = vmatprep.subr.bf16.mxu0 0
          %648 = vmatpush1.bf16.msra.mxu0 0
          %649 = vmatprep.subr.bf16.mxu0 0
          %650 = vmatpush1.bf16.msra.mxu0 0
          %651 = vmatprep.subr.bf16.mxu0 0
          %652 = vmatpush1.bf16.msra.mxu0 0
          %653 = vmatprep.subr.bf16.mxu0 0
          %654 = vmatpush1.bf16.msra.mxu0 0
          %655 = vmatprep.subr.bf16.mxu0 0
          %656 = vmatpush1.bf16.msra.mxu0 0
          %657 = vmatprep.subr.bf16.mxu0 0
          %658 = vmatpush1.bf16.msra.mxu0 0
          %659 = vmatprep.subr.bf16.mxu0 0
          %660 = vmatpush1.bf16.msra.mxu0 0
          %661 = vmatprep.subr.bf16.mxu0 0
          %662 = vmatpush1.bf16.msra.mxu0 0
          %663 = vmatprep.mubr.bf16.mxu0 0
          %664 = vmatmul.mubr.bf16.gmra.mrb[0].mxu0 %v566
          %v665 = vpop.f32.mrb[0].mxu0
          %v666 = vadd.f32 0.0, %v665
          %v667 = vpop.f32.mrb[0].mxu0
          %v668 = vpop.f32.mrb[0].mxu0
          %v669 = vpop.f32.mrb[0].mxu0
          %670 = vdwg.mxu0
          %v671 = vadd.f32 %v564, %v666
          %672 = vst [vmem:[#allocation2] sm:$0xff] %v671
        $region64: #{forward.7} parent=55 // pred_fallthru
          _
        %p673 = scmp.eq.s32.totalorder %s42, 1
        // Predicated region
        $region65: #{forward.7} parent=55 // pred_check
          %p674 = pneg %p673
        $region66: #{forward.7} parent=55 // pred_check_branch
          %676 = sbr.rel (%p674) target = $region68
        $region67: #{forward.7} parent=55 // pred_region
          %v677 = vld [vmem:[#allocation2] sm:$0xff]
          %v678 = vld [vmem:[%s527] sm:$0x1]
          %v680 = vlaneseq
          %v681 = vshrl.u32 %v680, 7
          %v682 = vsub.s32 0, %v681
          %v683 = vrot.slane %v678, %v682
          %v685 = vadd.f32 %v677, %v683
          %v686 = vtanh.pop %v685
          %v687 = vlaneseq
          %v688 = vshrl.u32 %v687, 7
          %vm689 = vcmp.lt.s32.totalorder %v688, 6
          %v690 = vsel %vm689, 1, 0
          %v691 = vcvt.s32.f32 %v690
          %v692 = vmul.f32 %v686, %v691
          %v693 = vrot.slane %v692, 4
          %v694 = vadd.f32 %v692, %v693
          %v695 = vrot.slane %v694, 2
          %v696 = vadd.f32 %v694, %v695
          %v697 = vrot.slane %v696, 1
          %v698 = vadd.f32 %v696, %v697
          %v699 = vmul.f32 %v698, 0.16666667
          %v700 = vsub.f32 %v686, %v699
          %v701 = vmul.f32 %v700, %v691
          %v702 = vmul.f32 %v701, %v701
          %v703 = vrot.slane %v702, 4
          %v704 = vadd.f32 %v702, %v703
          %v705 = vrot.slane %v704, 2
          %v706 = vadd.f32 %v704, %v705
          %v707 = vrot.slane %v706, 1
          %v708 = vadd.f32 %v706, %v707
          %v709 = vmul.f32 %v708, 0.16666667
          %v710 = vadd.f32 %v709, 1e-05
          %v711 = vrsqrt.pop %v710
          %v712 = vmul.f32 %v700, %v711
          %v713 = vld [vmem:[%s530] sm:$0x1]
          %v715 = vlaneseq
          %v716 = vshrl.u32 %v715, 7
          %v717 = vsub.s32 0, %v716
          %v718 = vrot.slane %v713, %v717
          %v720 = vmul.f32 %v712, %v718
          %v721 = vld [vmem:[%s533] sm:$0x1]
          %v723 = vlaneseq
          %v724 = vshrl.u32 %v723, 7
          %v725 = vsub.s32 0, %v724
          %v726 = vrot.slane %v721, %v725
          %v728 = vadd.f32 %v720, %v726
          %v729 = vmul.f32 %v728, %v691
          %730 = vst [vmem:[%s552] sm:$0xff] %v729
          %v731 = vpack.c.bf16 %v729, %v729
          %v732 = vld [vmem:[%s538] sm:$0xf]
          %v733 = vld [vmem:[%s538 + $0x4] sm:$0xf]
          %v734 = vld [vmem:[%s538 + $0x8] sm:$0xf]
          %v735 = vld [vmem:[%s538 + $0xc] sm:$0xf]
          %v736 = vld [vmem:[%s538 + $0x10] sm:$0xf]
          %v737 = vld [vmem:[%s538 + $0x14] sm:$0xf]
          %v738 = vld [vmem:[%s538 + $0x18] sm:$0xf]
          %v739 = vld [vmem:[%s538 + $0x1c] sm:$0xf]
          %v740 = vld [vmem:[%s538 + $0x20] sm:$0xf]
          %v741 = vld [vmem:[%s538 + $0x24] sm:$0xf]
          %v742 = vld [vmem:[%s538 + $0x28] sm:$0xf]
          %v743 = vld [vmem:[%s538 + $0x2c] sm:$0xf]
          %v744 = vld [vmem:[%s538 + $0x30] sm:$0xf]
          %v745 = vld [vmem:[%s538 + $0x34] sm:$0xf]
          %v746 = vld [vmem:[%s538 + $0x38] sm:$0xf]
          %v747 = vld [vmem:[%s538 + $0x3c] sm:$0xf]
          %v748 = vld [vmem:[%s542] sm:$0x1]
          %v750 = vlaneseq
          %v751 = vshrl.u32 %v750, 7
          %v752 = vsub.s32 0, %v751
          %v753 = vrot.slane %v748, %v752
          %v771 = vunpack.c.l.b16 %v732
          %v772 = vunpack.c.l.b16 %v733
          %v773 = vunpack.c.l.b16 %v734
          %v774 = vunpack.c.l.b16 %v735
          %v775 = vunpack.c.l.b16 %v736
          %v776 = vunpack.c.l.b16 %v737
          %v777 = vunpack.c.l.b16 %v738
          %v778 = vunpack.c.l.b16 %v739
          %v779 = vunpack.c.l.b16 %v740
          %v780 = vunpack.c.l.b16 %v741
          %v781 = vunpack.c.l.b16 %v742
          %v782 = vunpack.c.l.b16 %v743
          %v783 = vunpack.c.l.b16 %v744
          %v784 = vunpack.c.l.b16 %v745
          %v785 = vunpack.c.l.b16 %v746
          %v786 = vunpack.c.l.b16 %v747
          %v787 = vpack.c.b16 %v772, %v771
          %v788 = vpack.c.b16 %v774, %v773
          %v789 = vpack.c.b16 %v776, %v775
          %v790 = vpack.c.b16 %v778, %v777
          %v791 = vpack.c.b16 %v780, %v779
          %v792 = vpack.c.b16 %v782, %v781
          %v793 = vpack.c.b16 %v784, %v783
          %v794 = vpack.c.b16 %v786, %v785
          %803 = vmatprep.subr.bf16.mxu0 0
          %804 = vmatpush1.bf16.msra.mxu0 %v787
          %805 = vmatprep.subr.bf16.mxu0 0
          %806 = vmatpush1.bf16.msra.mxu0 %v788
          %807 = vmatprep.subr.bf16.mxu0 0
          %808 = vmatpush1.bf16.msra.mxu0 %v789
          %809 = vmatprep.subr.bf16.mxu0 0
          %810 = vmatpush1.bf16.msra.mxu0 %v790
          %811 = vmatprep.subr.bf16.mxu0 0
          %812 = vmatpush1.bf16.msra.mxu0 %v791
          %813 = vmatprep.subr.bf16.mxu0 0
          %814 = vmatpush1.bf16.msra.mxu0 %v792
          %815 = vmatprep.subr.bf16.mxu0 0
          %816 = vmatpush1.bf16.msra.mxu0 %v793
          %817 = vmatprep.subr.bf16.mxu0 0
          %818 = vmatpush1.bf16.msra.mxu0 %v794
          %819 = vmatprep.subr.bf16.mxu0 0
          %820 = vmatpush1.bf16.msra.mxu0 0
          %821 = vmatprep.subr.bf16.mxu0 0
          %822 = vmatpush1.bf16.msra.mxu0 0
          %823 = vmatprep.subr.bf16.mxu0 0
          %824 = vmatpush1.bf16.msra.mxu0 0
          %825 = vmatprep.subr.bf16.mxu0 0
          %826 = vmatpush1.bf16.msra.mxu0 0
          %827 = vmatprep.subr.bf16.mxu0 0
          %828 = vmatpush1.bf16.msra.mxu0 0
          %829 = vmatprep.subr.bf16.mxu0 0
          %830 = vmatpush1.bf16.msra.mxu0 0
          %831 = vmatprep.subr.bf16.mxu0 0
          %832 = vmatpush1.bf16.msra.mxu0 0
          %833 = vmatprep.subr.bf16.mxu0 0
          %834 = vmatpush1.bf16.msra.mxu0 0
          %835 = vmatprep.mubr.bf16.mxu0 0
          %836 = vmatmul.mubr.bf16.gmra.mrb[0].mxu0 %v731
          %v837 = vpop.f32.mrb[0].mxu0
          %v838 = vadd.f32 %v753, %v837
          %v839 = vpop.f32.mrb[0].mxu0
          %v840 = vpop.f32.mrb[0].mxu0
          %v841 = vpop.f32.mrb[0].mxu0
          %842 = vdwg.mxu0
          %v843 = vtanh.pop %v838
          %v844 = vld [vmem:[%s545] sm:$0x1]
          %v846 = vlaneseq
          %v847 = vshrl.u32 %v846, 7
          %v848 = vsub.s32 0, %v847
          %v849 = vrot.slane %v844, %v848
          %v851 = vmul.f32 %v843, %v849
          %v852 = vld [vmem:[%s548] sm:$0x1]
          %v854 = vlaneseq
          %v855 = vshrl.u32 %v854, 7
          %v856 = vsub.s32 0, %v855
          %v857 = vrot.slane %v852, %v856
          %v859 = vadd.f32 %v851, %v857
          %860 = vst [vmem:[#allocation7] sm:$0xff] %v859
        $region68: #{forward.7} parent=55 // pred_fallthru
          _
        %p861 = scmp.lt.s32.totalorder %s41, 0
        %s862 = scalar_select %p861, %s41, 0
        %s863 = smul.addr %s862, 8
        %s864 = scalar_lea.vmem %s12, %s863
        // Predicated region
        $region69: #{forward.7} parent=55 // pred_check
          %p865 = pneg %p313
        $region70: #{forward.7} parent=55 // pred_check_branch
          %867 = sbr.rel (%p865) target = $region72
        $region71: #{forward.7} parent=55 // pred_region
          _
        $region72: #{forward.7} parent=55 // pred_fallthru
          _
        // Predicated region
        $region73: #{forward.7} parent=55 // pred_check
          %p868 = pneg %p339
        $region74: #{forward.7} parent=55 // pred_check_branch
          %870 = sbr.rel (%p868) target = $region76
        $region75: #{forward.7} parent=55 // pred_region
          %s872 = ssub.s32 128, 128
          %873 = vsyncadd [#allocation8], %s872
          %s874 = smul.addr %s41, 128
          %s875 = scalar_lea.hbm %s13, %s874
          %s877 = sshll.u32 [#allocation7], 4
          %s878 = int_to_ptr.vmem [resolvable:$true] %s877
          %880 = dma.vmem_to_hbm [thread:$0]  %s878, 128, %s875, [#allocation8]
        $region76: #{forward.7} parent=55 // pred_fallthru
          _
        // Predicated region
        $region77: #{forward.7} parent=55 // pred_check
          %p881 = pneg %p313
        $region78: #{forward.7} parent=55 // pred_check_branch
          %883 = sbr.rel (%p881) target = $region80
        $region79: #{forward.7} parent=55 // pred_region
          %p884 = scmp.lt.s32.totalorder %s41, 0
          %s885 = scalar_select %p884, %s41, 0
          %s886 = smul.addr %s885, 8
          %s887 = scalar_lea.vmem %s12, %s886
        $region80: #{forward.7} parent=55 // pred_fallthru
          _
        // Predicated region
        $region81: #{forward.7} parent=55 // pred_check
          %p888 = pneg %p339
        $region82: #{forward.7} parent=55 // pred_check_branch
          %890 = sbr.rel (%p888) target = $region84
        $region83: #{forward.7} parent=55 // pred_region
          %891 = dma.done [#allocation8], 128
        $region84: #{forward.7} parent=55 // pred_fallthru
          _
      $region56: #{forward.7} parent=5 // pred_fallthru
        _
      %p892 = scmp.le.s32.totalorder 2, %s32
      // Predicated region
      $region85: #{forward.7} parent=5 // pred_check
        %p893 = pneg %p892
      $region86: #{forward.7} parent=5 // pred_check_branch
        %895 = sbr.rel (%p893) target = $region88
      $region87: #{forward.7} parent=5 // pred_region
        %s896 = ssub.s32 %s32, 2
      $region88: #{forward.7} parent=5 // pred_fallthru
        _
    $region6: #{forward.7} parent=1 // loop_footer
      %s36 = sadd.s32 1, %s32
    $region7: #{forward.7} parent=1 // loop_footer_branch
      %31 = sbr.rel target = $region3
    $region8: #{forward.7} parent=1 // loop_exit
      _
    %897 = vsyncpa [#allocation8], 1
    %s898 = scalar_lea.sflag [#allocation8], 1
    %899 = vsyncpa %s898, 1

// kernel: forward.9
$region0: #{forward.9}
  #allocation0 [shape = 'u32[]', space=smem, size = 0x4, offset = 0x4, fixed_abs, tag = 'smem constant byte address 0x4 - core index']
  #allocation1 [shape = 'u32[144,128]{1,0:T(1,128)}', space=vmem, size = 0x12000, scoped, tag = 'internal scratch']
  #allocation2 [shape = 'f32[8,128]{1,0:T(8,128)}', space=vmem, size = 0x1000, scoped, tag = 'scratch operand']
  #allocation3 [shape = 's32[1]{0}', space=sflag, size = 0x4, scoped, tag = 'scoped memory for forward.9']
  #allocation4 [shape = 's32[1]{0:T(128)S(6)}', space=smem, size = 0x200, scoped, tag = 'prefetched SMEM operand 0']
  #allocation5 [shape = 's32[1]{0:T(128)S(6)}', space=smem, size = 0x200, scoped, tag = 'prefetched SMEM operand 1']
  #allocation6 [shape = 's32[1]{0:T(128)S(6)}', space=smem, size = 0x200, scoped, tag = 'prefetched SMEM operand 2']
  %s0 = inlined_call_operand.<no memory space> [shape: s32[1], index: 0, kind: input, shape index: {}]
  %s1 = inlined_call_operand.<no memory space> [shape: s32[1], index: 1, kind: input, shape index: {}]
  %s2 = inlined_call_operand.<no memory space> [shape: s32[1], index: 2, kind: input, shape index: {}]
  %s3 = inlined_call_operand.vmem [shape: f32[8,512], index: 3, kind: input, shape index: {}]
  %s4 = inlined_call_operand.vmem [shape: bf16[1,128,128], index: 4, kind: input, shape index: {}]
  %s5 = inlined_call_operand.vmem [shape: f32[1,128], index: 5, kind: input, shape index: {}]
  %s6 = inlined_call_operand.vmem [shape: f32[1,128], index: 6, kind: input, shape index: {}]
  %s7 = inlined_call_operand.vmem [shape: f32[1,128], index: 7, kind: input, shape index: {}]
  %s8 = inlined_call_operand.vmem [shape: bf16[128,128], index: 8, kind: input, shape index: {}]
  %s9 = inlined_call_operand.vmem [shape: f32[1,128], index: 9, kind: input, shape index: {}]
  %s10 = inlined_call_operand.vmem [shape: f32[1,128], index: 10, kind: input, shape index: {}]
  %s11 = inlined_call_operand.vmem [shape: f32[1,128], index: 11, kind: input, shape index: {}]
  %s12 = inlined_call_operand.hbm [shape: f32[8,128], index: 12, kind: output, shape index: {0}]
  %s13 = inlined_call_operand.hbm [shape: f32[8,128], index: 13, kind: output, shape index: {1}]
  %14 = xla_tuple %s12, %s13
  %s15 = sld [smem:[#allocation0]]
  $region66: #{forward.9} parent=0
    _
  %s17 = ssub.s32 1, %s15
  %s18 = scalar_select 0, %s17, %s15
  %19 = sst [smem:[#allocation4]] %s0
  %20 = sst [smem:[#allocation5]] %s1
  %21 = sst [smem:[#allocation6]] %s2
  $region1: #{forward.9} parent=0
    #allocation7 [shape = 'u8[4096]{0}', space=vmem, size = 0x1000, scoped, tag = 'output window, operand 0, single buffered']
    #allocation8 [shape = 's32[1]{0}', space=sflag, size = 0x4, scoped, tag = 'scoped memory for forward.9']
    #allocation9 [shape = 'u8[4096]{0}', space=vmem, size = 0x1000, scoped, tag = 'output window, operand 1, single buffered']
    #allocation10 [shape = 's32[1]{0}', space=sflag, size = 0x4, scoped, tag = 'scoped memory for forward.9']
    %22 = vsyncpa [#allocation8], 0
    %23 = vsyncpa [#allocation10], 0
    // Predicated region
    $region2: #{forward.9} parent=1 // pred_check
      _
    $region3: #{forward.9} parent=1 // pred_check_branch
      %25 = sbr.rel (0) target = $region5
    $region4: #{forward.9} parent=1 // pred_region
      %s26 = sadd.s32 0, 0
      %s27 = sld [smem:[#allocation4 + %s26]]
      %p28 = scmp.lt.s32.totalorder %s27, 3
      %s29 = scalar_select %p28, %s27, 3
      %s30 = smul.addr %s29, 8
      %s31 = scalar_lea.vmem %s3, %s30
      %s32 = sadd.s32 0, 0
      %s33 = sld [smem:[#allocation4 + %s32]]
    $region5: #{forward.9} parent=1 // pred_fallthru
      _
    // Predicated region
    $region6: #{forward.9} parent=1 // pred_check
      _
    $region7: #{forward.9} parent=1 // pred_check_branch
      %35 = sbr.rel (0) target = $region9
    $region8: #{forward.9} parent=1 // pred_region
      %s36 = sadd.s32 0, 0
      %s37 = sld [smem:[#allocation5 + %s36]]
      %p38 = scmp.lt.s32.totalorder %s37, 0
      %s39 = scalar_select %p38, %s37, 0
      %s40 = smul.addr %s39, 16
      %s41 = smul.addr %s40, 4
      %s42 = scalar_lea.vmem %s4, %s41
      %s43 = sadd.s32 0, 0
      %s44 = sld [smem:[#allocation5 + %s43]]
    $region9: #{forward.9} parent=1 // pred_fallthru
      _
    // Predicated region
    $region10: #{forward.9} parent=1 // pred_check
      _
    $region11: #{forward.9} parent=1 // pred_check_branch
      %46 = sbr.rel (0) target = $region13
    $region12: #{forward.9} parent=1 // pred_region
      _
    $region13: #{forward.9} parent=1 // pred_fallthru
      _
    // Predicated region
    $region14: #{forward.9} parent=1 // pred_check
      _
    $region15: #{forward.9} parent=1 // pred_check_branch
      %48 = sbr.rel (0) target = $region17
    $region16: #{forward.9} parent=1 // pred_region
      _
    $region17: #{forward.9} parent=1 // pred_fallthru
      _
    // Predicated region
    $region18: #{forward.9} parent=1 // pred_check
      _
    $region19: #{forward.9} parent=1 // pred_check_branch
      %50 = sbr.rel (0) target = $region21
    $region20: #{forward.9} parent=1 // pred_region
      _
    $region21: #{forward.9} parent=1 // pred_fallthru
      _
    // Predicated region
    $region22: #{forward.9} parent=1 // pred_check
      _
    $region23: #{forward.9} parent=1 // pred_check_branch
      %52 = sbr.rel (0) target = $region25
    $region24: #{forward.9} parent=1 // pred_region
      _
    $region25: #{forward.9} parent=1 // pred_fallthru
      _
    // Predicated region
    $region26: #{forward.9} parent=1 // pred_check
      _
    $region27: #{forward.9} parent=1 // pred_check_branch
      %54 = sbr.rel (0) target = $region29
    $region28: #{forward.9} parent=1 // pred_region
      _
    $region29: #{forward.9} parent=1 // pred_fallthru
      _
    // Predicated region
    $region30: #{forward.9} parent=1 // pred_check
      _
    $region31: #{forward.9} parent=1 // pred_check_branch
      %56 = sbr.rel (0) target = $region33
    $region32: #{forward.9} parent=1 // pred_region
      _
    $region33: #{forward.9} parent=1 // pred_fallthru
      _
    // Predicated region
    $region34: #{forward.9} parent=1 // pred_check
      _
    $region35: #{forward.9} parent=1 // pred_check_branch
      %58 = sbr.rel (0) target = $region37
    $region36: #{forward.9} parent=1 // pred_region
      _
    $region37: #{forward.9} parent=1 // pred_fallthru
      _
    %s59 = sadd.s32 0, 0
    %s60 = sld [smem:[#allocation4 + %s59]]
    %p61 = scmp.lt.s32.totalorder %s60, 3
    %s62 = scalar_select %p61, %s60, 3
    %s63 = smul.addr %s62, 8
    %s64 = scalar_lea.vmem %s3, %s63
    %s65 = sadd.s32 0, 0
    %s66 = sld [smem:[#allocation5 + %s65]]
    %p67 = scmp.lt.s32.totalorder %s66, 0
    %s68 = scalar_select %p67, %s66, 0
    %s69 = smul.addr %s68, 16
    %s70 = smul.addr %s69, 4
    %s71 = scalar_lea.vmem %s4, %s70
    %s72 = sadd.s32 0, 0
    %s73 = sld [smem:[#allocation4 + %s72]]
    %p74 = scmp.lt.s32.totalorder %s73, 3
    %s75 = scalar_select %p74, %s73, 3
    %s76 = smul.addr %s75, 8
    %s77 = scalar_lea.vmem %s3, %s76
    %s78 = sadd.s32 0, 0
    %s79 = sld [smem:[#allocation4 + %s78]]
    %s80 = sadd.s32 0, 0
    %s81 = sld [smem:[#allocation5 + %s80]]
    %p82 = scmp.lt.s32.totalorder %s81, 0
    %s83 = scalar_select %p82, %s81, 0
    %s84 = smul.addr %s83, 16
    %s85 = smul.addr %s84, 4
    %s86 = scalar_lea.vmem %s4, %s85
    %s87 = sadd.s32 0, 0
    %s88 = sld [smem:[#allocation5 + %s87]]
    %p90 = scmp.eq.s32.totalorder 0, 0
    // Predicated region
    $region38: #{forward.9} parent=1 // pred_check
      %p91 = pneg %p90
    $region39: #{forward.9} parent=1 // pred_check_branch
      %93 = sbr.rel (%p91) target = $region41
    $region40: #{forward.9} parent=1 // pred_region
      %94 = vst [vmem:[#allocation2] sm:$0xff] 0.0
    $region41: #{forward.9} parent=1 // pred_fallthru
      _
    %s95 = sld [smem:[#allocation6]]
    %p96 = scmp.lt.s32.totalorder 0, %s95
    // Predicated region
    $region42: #{forward.9} parent=1 // pred_check
      %p97 = pneg %p96
    $region43: #{forward.9} parent=1 // pred_check_branch
      %99 = sbr.rel (%p97) target = $region45
    $region44: #{forward.9} parent=1 // pred_region
      %v100 = vld [vmem:[#allocation2] sm:$0xff]
      %v101 = vld [vmem:[%s77] sm:$0xff]
      %v102 = vpack.c.bf16 %v101, %v101
      %v103 = vld [vmem:[%s86] sm:$0xf]
      %v104 = vld [vmem:[%s86 + $0x4] sm:$0xf]
      %v105 = vld [vmem:[%s86 + $0x8] sm:$0xf]
      %v106 = vld [vmem:[%s86 + $0xc] sm:$0xf]
      %v107 = vld [vmem:[%s86 + $0x10] sm:$0xf]
      %v108 = vld [vmem:[%s86 + $0x14] sm:$0xf]
      %v109 = vld [vmem:[%s86 + $0x18] sm:$0xf]
      %v110 = vld [vmem:[%s86 + $0x1c] sm:$0xf]
      %v111 = vld [vmem:[%s86 + $0x20] sm:$0xf]
      %v112 = vld [vmem:[%s86 + $0x24] sm:$0xf]
      %v113 = vld [vmem:[%s86 + $0x28] sm:$0xf]
      %v114 = vld [vmem:[%s86 + $0x2c] sm:$0xf]
      %v115 = vld [vmem:[%s86 + $0x30] sm:$0xf]
      %v116 = vld [vmem:[%s86 + $0x34] sm:$0xf]
      %v117 = vld [vmem:[%s86 + $0x38] sm:$0xf]
      %v118 = vld [vmem:[%s86 + $0x3c] sm:$0xf]
      %v135 = vunpack.c.l.b16 %v103
      %v136 = vunpack.c.l.b16 %v104
      %v137 = vunpack.c.l.b16 %v105
      %v138 = vunpack.c.l.b16 %v106
      %v139 = vunpack.c.l.b16 %v107
      %v140 = vunpack.c.l.b16 %v108
      %v141 = vunpack.c.l.b16 %v109
      %v142 = vunpack.c.l.b16 %v110
      %v143 = vunpack.c.l.b16 %v111
      %v144 = vunpack.c.l.b16 %v112
      %v145 = vunpack.c.l.b16 %v113
      %v146 = vunpack.c.l.b16 %v114
      %v147 = vunpack.c.l.b16 %v115
      %v148 = vunpack.c.l.b16 %v116
      %v149 = vunpack.c.l.b16 %v117
      %v150 = vunpack.c.l.b16 %v118
      %v151 = vpack.c.b16 %v136, %v135
      %v152 = vpack.c.b16 %v138, %v137
      %v153 = vpack.c.b16 %v140, %v139
      %v154 = vpack.c.b16 %v142, %v141
      %v155 = vpack.c.b16 %v144, %v143
      %v156 = vpack.c.b16 %v146, %v145
      %v157 = vpack.c.b16 %v148, %v147
      %v158 = vpack.c.b16 %v150, %v149
      %167 = vmatprep.subr.bf16.mxu0 0
      %168 = vmatpush1.bf16.msra.mxu0 %v151
      %169 = vmatprep.subr.bf16.mxu0 0
      %170 = vmatpush1.bf16.msra.mxu0 %v152
      %171 = vmatprep.subr.bf16.mxu0 0
      %172 = vmatpush1.bf16.msra.mxu0 %v153
      %173 = vmatprep.subr.bf16.mxu0 0
      %174 = vmatpush1.bf16.msra.mxu0 %v154
      %175 = vmatprep.subr.bf16.mxu0 0
      %176 = vmatpush1.bf16.msra.mxu0 %v155
      %177 = vmatprep.subr.bf16.mxu0 0
      %178 = vmatpush1.bf16.msra.mxu0 %v156
      %179 = vmatprep.subr.bf16.mxu0 0
      %180 = vmatpush1.bf16.msra.mxu0 %v157
      %181 = vmatprep.subr.bf16.mxu0 0
      %182 = vmatpush1.bf16.msra.mxu0 %v158
      %183 = vmatprep.subr.bf16.mxu0 0
      %184 = vmatpush1.bf16.msra.mxu0 0
      %185 = vmatprep.subr.bf16.mxu0 0
      %186 = vmatpush1.bf16.msra.mxu0 0
      %187 = vmatprep.subr.bf16.mxu0 0
      %188 = vmatpush1.bf16.msra.mxu0 0
      %189 = vmatprep.subr.bf16.mxu0 0
      %190 = vmatpush1.bf16.msra.mxu0 0
      %191 = vmatprep.subr.bf16.mxu0 0
      %192 = vmatpush1.bf16.msra.mxu0 0
      %193 = vmatprep.subr.bf16.mxu0 0
      %194 = vmatpush1.bf16.msra.mxu0 0
      %195 = vmatprep.subr.bf16.mxu0 0
      %196 = vmatpush1.bf16.msra.mxu0 0
      %197 = vmatprep.subr.bf16.mxu0 0
      %198 = vmatpush1.bf16.msra.mxu0 0
      %199 = vmatprep.mubr.bf16.mxu0 0
      %200 = vmatmul.mubr.bf16.gmra.mrb[0].mxu0 %v102
      %v201 = vpop.f32.mrb[0].mxu0
      %v202 = vadd.f32 0.0, %v201
      %v203 = vpop.f32.mrb[0].mxu0
      %v204 = vpop.f32.mrb[0].mxu0
      %v205 = vpop.f32.mrb[0].mxu0
      %206 = vdwg.mxu0
      %v207 = vadd.f32 %v100, %v202
      %208 = vst [vmem:[#allocation2] sm:$0xff] %v207
    $region45: #{forward.9} parent=1 // pred_fallthru
      _
    // Predicated region
    $region46: #{forward.9} parent=1 // pred_check
      %p209 = pneg %p90
    $region47: #{forward.9} parent=1 // pred_check_branch
      %211 = sbr.rel (%p209) target = $region49
    $region48: #{forward.9} parent=1 // pred_region
      %v212 = vld [vmem:[#allocation2] sm:$0xff]
      %v213 = vld [vmem:[%s5] sm:$0x1]
      %v215 = vlaneseq
      %v216 = vshrl.u32 %v215, 7
      %v217 = vsub.s32 0, %v216
      %v218 = vrot.slane %v213, %v217
      %v220 = vadd.f32 %v212, %v218
      %v221 = vtanh.pop %v220
      %v222 = vlaneseq
      %v223 = vshrl.u32 %v222, 7
      %vm224 = vcmp.lt.s32.totalorder %v223, 6
      %v225 = vsel %vm224, 1, 0
      %v226 = vcvt.s32.f32 %v225
      %v227 = vmul.f32 %v221, %v226
      %v228 = vrot.slane %v227, 4
      %v229 = vadd.f32 %v227, %v228
      %v230 = vrot.slane %v229, 2
      %v231 = vadd.f32 %v229, %v230
      %v232 = vrot.slane %v231, 1
      %v233 = vadd.f32 %v231, %v232
      %v234 = vmul.f32 %v233, 0.16666667
      %v235 = vsub.f32 %v221, %v234
      %v236 = vmul.f32 %v235, %v226
      %v237 = vmul.f32 %v236, %v236
      %v238 = vrot.slane %v237, 4
      %v239 = vadd.f32 %v237, %v238
      %v240 = vrot.slane %v239, 2
      %v241 = vadd.f32 %v239, %v240
      %v242 = vrot.slane %v241, 1
      %v243 = vadd.f32 %v241, %v242
      %v244 = vmul.f32 %v243, 0.16666667
      %v245 = vadd.f32 %v244, 1e-05
      %v246 = vrsqrt.pop %v245
      %v247 = vmul.f32 %v235, %v246
      %v248 = vld [vmem:[%s6] sm:$0x1]
      %v250 = vlaneseq
      %v251 = vshrl.u32 %v250, 7
      %v252 = vsub.s32 0, %v251
      %v253 = vrot.slane %v248, %v252
      %v255 = vmul.f32 %v247, %v253
      %v256 = vld [vmem:[%s7] sm:$0x1]
      %v258 = vlaneseq
      %v259 = vshrl.u32 %v258, 7
      %v260 = vsub.s32 0, %v259
      %v261 = vrot.slane %v256, %v260
      %v263 = vadd.f32 %v255, %v261
      %v264 = vmul.f32 %v263, %v226
      %265 = vst [vmem:[#allocation7] sm:$0xff] %v264
      %v266 = vpack.c.bf16 %v264, %v264
      %v267 = vld [vmem:[%s8] sm:$0xf]
      %v268 = vld [vmem:[%s8 + $0x4] sm:$0xf]
      %v269 = vld [vmem:[%s8 + $0x8] sm:$0xf]
      %v270 = vld [vmem:[%s8 + $0xc] sm:$0xf]
      %v271 = vld [vmem:[%s8 + $0x10] sm:$0xf]
      %v272 = vld [vmem:[%s8 + $0x14] sm:$0xf]
      %v273 = vld [vmem:[%s8 + $0x18] sm:$0xf]
      %v274 = vld [vmem:[%s8 + $0x1c] sm:$0xf]
      %v275 = vld [vmem:[%s8 + $0x20] sm:$0xf]
      %v276 = vld [vmem:[%s8 + $0x24] sm:$0xf]
      %v277 = vld [vmem:[%s8 + $0x28] sm:$0xf]
      %v278 = vld [vmem:[%s8 + $0x2c] sm:$0xf]
      %v279 = vld [vmem:[%s8 + $0x30] sm:$0xf]
      %v280 = vld [vmem:[%s8 + $0x34] sm:$0xf]
      %v281 = vld [vmem:[%s8 + $0x38] sm:$0xf]
      %v282 = vld [vmem:[%s8 + $0x3c] sm:$0xf]
      %v283 = vld [vmem:[%s9] sm:$0x1]
      %v285 = vlaneseq
      %v286 = vshrl.u32 %v285, 7
      %v287 = vsub.s32 0, %v286
      %v288 = vrot.slane %v283, %v287
      %v306 = vunpack.c.l.b16 %v267
      %v307 = vunpack.c.l.b16 %v268
      %v308 = vunpack.c.l.b16 %v269
      %v309 = vunpack.c.l.b16 %v270
      %v310 = vunpack.c.l.b16 %v271
      %v311 = vunpack.c.l.b16 %v272
      %v312 = vunpack.c.l.b16 %v273
      %v313 = vunpack.c.l.b16 %v274
      %v314 = vunpack.c.l.b16 %v275
      %v315 = vunpack.c.l.b16 %v276
      %v316 = vunpack.c.l.b16 %v277
      %v317 = vunpack.c.l.b16 %v278
      %v318 = vunpack.c.l.b16 %v279
      %v319 = vunpack.c.l.b16 %v280
      %v320 = vunpack.c.l.b16 %v281
      %v321 = vunpack.c.l.b16 %v282
      %v322 = vpack.c.b16 %v307, %v306
      %v323 = vpack.c.b16 %v309, %v308
      %v324 = vpack.c.b16 %v311, %v310
      %v325 = vpack.c.b16 %v313, %v312
      %v326 = vpack.c.b16 %v315, %v314
      %v327 = vpack.c.b16 %v317, %v316
      %v328 = vpack.c.b16 %v319, %v318
      %v329 = vpack.c.b16 %v321, %v320
      %338 = vmatprep.subr.bf16.mxu0 0
      %339 = vmatpush1.bf16.msra.mxu0 %v322
      %340 = vmatprep.subr.bf16.mxu0 0
      %341 = vmatpush1.bf16.msra.mxu0 %v323
      %342 = vmatprep.subr.bf16.mxu0 0
      %343 = vmatpush1.bf16.msra.mxu0 %v324
      %344 = vmatprep.subr.bf16.mxu0 0
      %345 = vmatpush1.bf16.msra.mxu0 %v325
      %346 = vmatprep.subr.bf16.mxu0 0
      %347 = vmatpush1.bf16.msra.mxu0 %v326
      %348 = vmatprep.subr.bf16.mxu0 0
      %349 = vmatpush1.bf16.msra.mxu0 %v327
      %350 = vmatprep.subr.bf16.mxu0 0
      %351 = vmatpush1.bf16.msra.mxu0 %v328
      %352 = vmatprep.subr.bf16.mxu0 0
      %353 = vmatpush1.bf16.msra.mxu0 %v329
      %354 = vmatprep.subr.bf16.mxu0 0
      %355 = vmatpush1.bf16.msra.mxu0 0
      %356 = vmatprep.subr.bf16.mxu0 0
      %357 = vmatpush1.bf16.msra.mxu0 0
      %358 = vmatprep.subr.bf16.mxu0 0
      %359 = vmatpush1.bf16.msra.mxu0 0
      %360 = vmatprep.subr.bf16.mxu0 0
      %361 = vmatpush1.bf16.msra.mxu0 0
      %362 = vmatprep.subr.bf16.mxu0 0
      %363 = vmatpush1.bf16.msra.mxu0 0
      %364 = vmatprep.subr.bf16.mxu0 0
      %365 = vmatpush1.bf16.msra.mxu0 0
      %366 = vmatprep.subr.bf16.mxu0 0
      %367 = vmatpush1.bf16.msra.mxu0 0
      %368 = vmatprep.subr.bf16.mxu0 0
      %369 = vmatpush1.bf16.msra.mxu0 0
      %370 = vmatprep.mubr.bf16.mxu0 0
      %371 = vmatmul.mubr.bf16.gmra.mrb[0].mxu0 %v266
      %v372 = vpop.f32.mrb[0].mxu0
      %v373 = vadd.f32 %v288, %v372
      %v374 = vpop.f32.mrb[0].mxu0
      %v375 = vpop.f32.mrb[0].mxu0
      %v376 = vpop.f32.mrb[0].mxu0
      %377 = vdwg.mxu0
      %v378 = vtanh.pop %v373
      %v379 = vld [vmem:[%s10] sm:$0x1]
      %v381 = vlaneseq
      %v382 = vshrl.u32 %v381, 7
      %v383 = vsub.s32 0, %v382
      %v384 = vrot.slane %v379, %v383
      %v386 = vmul.f32 %v378, %v384
      %v387 = vld [vmem:[%s11] sm:$0x1]
      %v389 = vlaneseq
      %v390 = vshrl.u32 %v389, 7
      %v391 = vsub.s32 0, %v390
      %v392 = vrot.slane %v387, %v391
      %v394 = vadd.f32 %v386, %v392
      %v395 = vxor.u32 %v394, 2147483648
      %v396 = vmul.f32 %v395, 1.442695
      %v397 = vpow.pop %v396
      %v398 = vadd.f32 %v397, 1.0
      %v399 = vrcp.pop %v398
      %v400 = vmul.f32 1.0, %v399
      %401 = vst [vmem:[#allocation9] sm:$0xff] %v400
    $region49: #{forward.9} parent=1 // pred_fallthru
      _
    // Predicated region
    $region50: #{forward.9} parent=1 // pred_check
      _
    $region51: #{forward.9} parent=1 // pred_check_branch
      %403 = sbr.rel (0) target = $region53
    $region52: #{forward.9} parent=1 // pred_region
      %s405 = ssub.s32 128, 128
      %406 = vsyncadd [#allocation8], %s405
      %s408 = sshll.u32 [#allocation7], 4
      %s409 = int_to_ptr.vmem [resolvable:$true] %s408
      %411 = dma.vmem_to_hbm [thread:$0]  %s409, 128, %s12, [#allocation8]
    $region53: #{forward.9} parent=1 // pred_fallthru
      _
    // Predicated region
    $region54: #{forward.9} parent=1 // pred_check
      _
    $region55: #{forward.9} parent=1 // pred_check_branch
      %413 = sbr.rel (0) target = $region57
    $region56: #{forward.9} parent=1 // pred_region
      %s415 = ssub.s32 128, 128
      %416 = vsyncadd [#allocation10], %s415
      %s418 = sshll.u32 [#allocation9], 4
      %s419 = int_to_ptr.vmem [resolvable:$true] %s418
      %421 = dma.vmem_to_hbm [thread:$0]  %s419, 128, %s13, [#allocation10]
    $region57: #{forward.9} parent=1 // pred_fallthru
      _
    // Predicated region
    $region58: #{forward.9} parent=1 // pred_check
      _
    $region59: #{forward.9} parent=1 // pred_check_branch
      %423 = sbr.rel (0) target = $region61
    $region60: #{forward.9} parent=1 // pred_region
      %424 = dma.done [#allocation8], 128
    $region61: #{forward.9} parent=1 // pred_fallthru
      _
    // Predicated region
    $region62: #{forward.9} parent=1 // pred_check
      _
    $region63: #{forward.9} parent=1 // pred_check_branch
      %426 = sbr.rel (0) target = $region65
    $region64: #{forward.9} parent=1 // pred_region
      %427 = dma.done [#allocation10], 128
    $region65: #{forward.9} parent=1 // pred_fallthru
      _
    %428 = vsyncpa [#allocation8], 1
    %429 = vsyncpa [#allocation10], 1

</llo_original>
